<compile_context>
chip_gen: v7x
topology: tpu7x:2x2x1
jax: 0.10.0
libtpu: 0.0.40
codegen_flags: <defaults>
</compile_context>

<pallas_src>
import functools
import math

import jax
import jax.numpy as jnp
from jax.experimental import pallas as pl
from jax.experimental.pallas import tpu as pltpu

NEG_SLOPE = 0.2        # LeakyReLU slope
BN_EPS = 1e-5          # PyTorch BatchNorm1d default eps
LANE = 128


def _cdiv(a, b):
    return (a + b - 1) // b


def _pad_to(n, m):
    return max(m, _cdiv(n, m) * m)


# ----------------------------- Pallas kernels ------------------------------

def _conv0_kernel(xp_ref, w_ref, b_ref, o_ref, *, bb, l_out, pad_out):
    """Layer 0 (C_in == 1): Conv1d(k=4, s=2, p=1) as 4 broadcast VPU FMAs +
    bias + LeakyReLU.  Taps are formed in-kernel from the single pairs-packed
    input; output channels are lane-padded to 128 (unmasked stores) and, when
    another conv follows, the L-padding borders are written here so the
    wrapper never materializes a padded copy."""
    cp = w_ref.shape[1]
    off = 1 if pad_out else 0
    if pad_out:
        zrow = jnp.zeros((bb, 1, cp), o_ref.dtype)
        o_ref[:, 0:1, :] = zrow
        o_ref[:, l_out + 1:l_out + 2, :] = zrow
    w0 = w_ref[0:1, :]
    w1 = w_ref[1:2, :]
    w2 = w_ref[2:3, :]
    w3 = w_ref[3:4, :]
    bias = b_ref[...]
    for b in range(bb):                       # bb is small & static (unrolled)
        a = xp_ref[b, 0:l_out, :]             # (l_out, 2): taps 0, 1
        c = xp_ref[b, 1:l_out + 1, :]         # (l_out, 2): taps 2, 3
        y = (a[:, 0:1] * w0 + a[:, 1:2] * w1
             + c[:, 0:1] * w2 + c[:, 1:2] * w3 + bias)
        y = jnp.where(y > 0, y, NEG_SLOPE * y)
        o_ref[b, off:off + l_out, :] = y.astype(o_ref.dtype)


def _conv_pass1_kernel(pr_ref, wab_ref, wcd_ref, y_ref, st_ref, *, bb, l_out):
    """BN-layer pass 1: Conv1d(k=4, s=2, p=1) as TWO K=2*C_in_pad bf16 MXU
    matmuls (taps (0,1) and (2,3)) with f32 accumulation, plus per-channel
    partial sum / sum-of-squares for train-mode BatchNorm statistics.
    The conv bias is omitted: it cancels exactly under BN mean subtraction."""
    wab = wab_ref[...]
    wcd = wcd_ref[...]
    cout_p = wab.shape[1]
    s = jnp.zeros((1, cout_p), jnp.float32)
    sq = jnp.zeros((1, cout_p), jnp.float32)
    for b in range(bb):                       # bb is small & static (unrolled)
        a = pr_ref[b, 0:l_out, :]             # (l_out, 2*cin_p): taps 0, 1
        c = pr_ref[b, 1:l_out + 1, :]         # (l_out, 2*cin_p): taps 2, 3
        acc = (jnp.dot(a, wab, preferred_element_type=jnp.float32)
               + jnp.dot(c, wcd, preferred_element_type=jnp.float32))
        s = s + jnp.sum(acc, axis=0, keepdims=True)
        sq = sq + jnp.sum(acc * acc, axis=0, keepdims=True)
        y_ref[b, :, :] = acc.astype(y_ref.dtype)
    st_ref[...] = jnp.concatenate([s, sq], axis=0)


def _bn_lrelu_kernel(y_ref, sc_ref, sh_ref, o_ref, *, bb, l_out, pad_out):
    """BN-layer pass 2: y * scale + shift (folded train-mode BatchNorm) +
    LeakyReLU, M-tiled; writes the next layer's L-padding borders when a conv
    follows."""
    cp = sc_ref.shape[-1]
    off = 1 if pad_out else 0
    if pad_out:
        zrow = jnp.zeros((bb, 1, cp), o_ref.dtype)
        o_ref[:, 0:1, :] = zrow
        o_ref[:, l_out + 1:l_out + 2, :] = zrow
    z = y_ref[...].astype(jnp.float32) * sc_ref[...] + sh_ref[...]
    z = jnp.where(z > 0, z, NEG_SLOPE * z)
    o_ref[:, off:off + l_out, :] = z.astype(o_ref.dtype)


def _linear_kernel(x_ref, w_ref, b_ref, o_ref):
    """Final Linear: bf16 matmul, f32 accumulate + bias.  The weight is
    pre-permuted (PyTorch NCL flatten order), channel-pad aware and
    lane-padded to 128 output columns (unmasked stores)."""
    o_ref[...] = (jnp.dot(x_ref[...], w_ref[...],
                          preferred_element_type=jnp.float32) + b_ref[...])


# --------------------------- pallas_call wrappers ---------------------------

def _vmem_limit_bytes():
    """Generation-aware VMEM budget: 3/4 of physical, capped at 100 MiB
    (~96 MiB on v5e/v6e's 128 MiB, ~48 MiB on v7x's 64 MiB)."""
    cap = None
    try:
        cap = getattr(pltpu.get_tpu_info(), "vmem_capacity_bytes", None)
    except Exception:
        cap = None
    if not cap:
        cap = 64 * 1024 * 1024
    return int(min(cap * 3 // 4, 100 * 1024 * 1024))


def _cparams(sem="parallel"):
    return pltpu.CompilerParams(dimension_semantics=(sem,),
                                vmem_limit_bytes=_vmem_limit_bytes())


def _full_spec(shape):
    zeros = (0,) * len(shape)
    return pl.BlockSpec(shape, lambda i: zeros)


def _batch_block(batch, rows_per_item, target_rows=1024, max_bb=16):
    """Batch items per grid step: enough rows to amortize the ~0.35us per-step
    overhead, bounded so double-buffered blocks stay well inside VMEM.  Must
    divide `batch` exactly."""
    bb = max(1, min(max_bb, target_rows // max(rows_per_item, 1)))
    bb = min(bb, batch)
    while batch % bb:
        bb -= 1
    return bb


def _row_block(m, bytes_per_row, target_bytes=8 << 20, cap=4096):
    """Row tile for flat-M kernels: full array if small, else the largest
    multiple-of-8 divisor within the byte budget."""
    cap = max(8, min(cap, target_bytes // max(bytes_per_row, 1)))
    if m <= cap:
        return m
    bm = cap - cap % 8
    while bm >= 8:
        if m % bm == 0:
            return bm
        bm -= 8
    return m  # TODO(synk): masked last block for ragged M instead of full fallback.


def _conv0_call(x_pairs, w, b, *, pad_out):
    bsz, p1, _ = x_pairs.shape
    l_out = p1 - 1
    cp = w.shape[1]
    bb = _batch_block(bsz, l_out)
    l_o = l_out + (2 if pad_out else 0)
    kernel = functools.partial(_conv0_kernel, bb=bb, l_out=l_out, pad_out=pad_out)
    return pl.pallas_call(
        kernel,
        grid=(bsz // bb,),
        in_specs=[pl.BlockSpec((bb, p1, 2), lambda i: (i, 0, 0)),
                  _full_spec(w.shape), _full_spec(b.shape)],
        out_specs=pl.BlockSpec((bb, l_o, cp), lambda i: (i, 0, 0)),
        out_shape=jax.ShapeDtypeStruct((bsz, l_o, cp), jnp.bfloat16),
        compiler_params=_cparams("parallel"),
    )(x_pairs, w, b)


def _conv_pass1_call(pairs, wab, wcd):
    bsz, p1, k2 = pairs.shape
    l_out = p1 - 1
    cout_p = wab.shape[1]
    bb = _batch_block(bsz, l_out)
    nblk = bsz // bb
    kernel = functools.partial(_conv_pass1_kernel, bb=bb, l_out=l_out)
    flops = 2 * 2 * bsz * l_out * k2 * cout_p
    bytes_acc = (pairs.size * pairs.dtype.itemsize
                 + (wab.size + wcd.size) * wab.dtype.itemsize
                 + bsz * l_out * cout_p * 2 + nblk * 2 * cout_p * 4)
    y, st = pl.pallas_call(
        kernel,
        grid=(nblk,),
        in_specs=[pl.BlockSpec((bb, p1, k2), lambda i: (i, 0, 0)),
                  _full_spec(wab.shape), _full_spec(wcd.shape)],
        out_specs=(pl.BlockSpec((bb, l_out, cout_p), lambda i: (i, 0, 0)),
                   pl.BlockSpec((None, 2, cout_p), lambda i: (i, 0, 0))),
        out_shape=(jax.ShapeDtypeStruct((bsz, l_out, cout_p), jnp.bfloat16),
                   jax.ShapeDtypeStruct((nblk, 2, cout_p), jnp.float32)),
        compiler_params=_cparams("parallel"),
        cost_estimate=pl.CostEstimate(flops=int(flops), transcendentals=0,
                                      bytes_accessed=int(bytes_acc)),
    )(pairs, wab, wcd)
    return y, st


def _bn_lrelu_call(y_pre, scale, shift, *, pad_out):
    bsz, l_out, cp = y_pre.shape
    bb = _batch_block(bsz, l_out)
    l_o = l_out + (2 if pad_out else 0)
    kernel = functools.partial(_bn_lrelu_kernel, bb=bb, l_out=l_out, pad_out=pad_out)
    return pl.pallas_call(
        kernel,
        grid=(bsz // bb,),
        in_specs=[pl.BlockSpec((bb, l_out, cp), lambda i: (i, 0, 0)),
                  _full_spec(scale.shape), _full_spec(shift.shape)],
        out_specs=pl.BlockSpec((bb, l_o, cp), lambda i: (i, 0, 0)),
        out_shape=jax.ShapeDtypeStruct((bsz, l_o, cp), jnp.bfloat16),
        compiler_params=_cparams("parallel"),
    )(y_pre, scale, shift)


def _linear_call(x, w, b):
    bsz, feat = x.shape
    lat_pad = w.shape[1]
    bm = _row_block(bsz, feat * 2)
    return pl.pallas_call(
        _linear_kernel,
        grid=(bsz // bm,),
        in_specs=[pl.BlockSpec((bm, feat), lambda i: (i, 0)),
                  _full_spec(w.shape), _full_spec(b.shape)],
        out_specs=pl.BlockSpec((bm, lat_pad), lambda i: (i, 0)),
        out_shape=jax.ShapeDtypeStruct((bsz, lat_pad), jnp.float32),
        compiler_params=_cparams("parallel"),
    )(x, w, b)


# ------------------------------ params + glue -------------------------------

def init_params(key, data_size, input_channel, latent_size):
    """Raw parameters mirroring the PyTorch module."""
    layer_num = int(math.log2(data_size)) - 3
    max_channel = data_size * 2
    final_size = 4
    params = {}
    prev_c = input_channel
    for i in range(layer_num + 1):
        c_out = max_channel // (2 ** (layer_num - i))
        key, kw, kb = jax.random.split(key, 3)
        params[f"conv{i}_w"] = 0.1 * jax.random.normal(kw, (c_out, prev_c, 4), jnp.float32)
        params[f"conv{i}_b"] = 0.1 * jax.random.normal(kb, (c_out,), jnp.float32)
        if i > 0:
            key, kg, kbt = jax.random.split(key, 3)
            params[f"bn{i}_g"] = 1.0 + 0.1 * jax.random.normal(kg, (c_out,), jnp.float32)
            params[f"bn{i}_b"] = 0.1 * jax.random.normal(kbt, (c_out,), jnp.float32)
        prev_c = c_out
    key, kw, kb = jax.random.split(key, 3)
    feat = final_size * max_channel
    params["lin_w"] = 0.1 * jax.random.normal(kw, (latent_size, feat), jnp.float32)
    params["lin_b"] = 0.1 * jax.random.normal(kb, (latent_size,), jnp.float32)
    return params


def prepare_params(params, data_size, latent_size):
    """One-time packing of raw params into kernel-friendly layouts:
    channel-lane padding to 128, per-tap-pair weight folding (K = 2*C_in_pad),
    bf16 matmul operands, pre-permuted / pre-transposed / lane-padded Linear
    weight.  Done once, outside the per-call hot path."""
    layer_num = int(math.log2(data_size)) - 3
    max_channel = data_size * 2
    final_size = 4
    packed = {}
    cp_last = None
    for i in range(layer_num + 1):
        w = params[f"conv{i}_w"]                       # (C_out, C_in, 4)
        c_out, c_in, _ = w.shape
        cout_p = _pad_to(c_out, LANE)
        wt = jnp.transpose(w, (2, 1, 0))               # (4, C_in, C_out)
        if i == 0:
            assert c_in == 1, "forward() unsqueezes a single input channel"
            w0 = jnp.zeros((4, cout_p), jnp.float32).at[:, :c_out].set(wt[:, 0, :])
            b0 = jnp.zeros((1, cout_p), jnp.float32).at[:, :c_out].set(
                params["conv0_b"].reshape(1, c_out))
            packed["conv0_w"] = w0
            packed["conv0_b"] = b0
        else:
            cin_p = _pad_to(c_in, LANE)
            w4 = jnp.zeros((4, cin_p, cout_p), jnp.float32).at[:, :c_in, :c_out].set(wt)
            # Taps (0,1) and (2,3) folded into two K = 2*C_in_pad matmul weights.
            packed[f"conv{i}_wab"] = w4[0:2].reshape(2 * cin_p, cout_p).astype(jnp.bfloat16)
            packed[f"conv{i}_wcd"] = w4[2:4].reshape(2 * cin_p, cout_p).astype(jnp.bfloat16)
            # Conv bias intentionally dropped: train-mode BN subtracts it out.
            packed[f"bn{i}_g"] = jnp.zeros((cout_p,), jnp.float32).at[:c_out].set(
                params[f"bn{i}_g"])
            packed[f"bn{i}_b"] = jnp.zeros((cout_p,), jnp.float32).at[:c_out].set(
                params[f"bn{i}_b"])
        cp_last = cout_p

    # PyTorch flattens NCL (B, C, L) -> feature index c*final_size + l, while
    # our channels-last layout gives l*C_pad + c.  Fold that permutation, the
    # channel padding, the transpose and lane padding into the weight once.
    lat_pad = _pad_to(latent_size, LANE)
    lin_w = params["lin_w"]                            # (latent, max_channel*4)
    w3 = jnp.transpose(lin_w.reshape(latent_size, max_channel, final_size),
                       (2, 1, 0))                      # (l, c, latent)
    wl = jnp.zeros((final_size, cp_last, lat_pad), jnp.float32)
    wl = wl.at[:, :max_channel, :latent_size].set(w3)
    packed["lin_w"] = wl.reshape(final_size * cp_last, lat_pad).astype(jnp.bfloat16)
    packed["lin_b"] = jnp.zeros((1, lat_pad), jnp.float32).at[:, :latent_size].set(
        params["lin_b"].reshape(1, latent_size))
    return packed


def conv_encoder_forward(x, packed, data_size, latent_size):
    """x: (B, data_size) float32 -> (B, latent_size) float32."""
    layer_num = int(math.log2(data_size)) - 3
    final_size = 4
    bsz, length = x.shape
    assert length == data_size

    # ---- layer 0: Conv1d(1 -> 16) + bias + LeakyReLU (lane-padded C_out) ----
    xp = jnp.pad(x.astype(jnp.float32), ((0, 0), (1, 1)))        # (B, L+2)
    x_pairs = xp.reshape(bsz, length // 2 + 1, 2)                # free reshape
    pad0 = layer_num > 0
    h = _conv0_call(x_pairs, packed["conv0_w"], packed["conv0_b"], pad_out=pad0)
    length = length // 2                                         # h: (B, L(+2), 128)

    # ---- BN conv layers: two-pass (conv+stats, then normalize), M-tiled ----
    for i in range(1, layer_num + 1):
        wab = packed[f"conv{i}_wab"]
        wcd = packed[f"conv{i}_wcd"]
        cin_p = wab.shape[0] // 2
        cout_p = wab.shape[1]
        l_out = length // 2
        pairs = h.reshape(bsz, l_out + 1, 2 * cin_p)             # free reshape of padded act
        y_pre, st = _conv_pass1_call(pairs, wab, wcd)

        # Finalize train-mode BN statistics (tiny XLA reduction over blocks).
        n = jnp.float32(bsz * l_out)
        mean = jnp.sum(st[:, 0, :], axis=0) / n
        var = jnp.maximum(jnp.sum(st[:, 1, :], axis=0) / n - mean * mean, 0.0)
        scale = packed[f"bn{i}_g"] * jax.lax.rsqrt(var + BN_EPS)
        shift = packed[f"bn{i}_b"] - mean * scale

        pad_out = i < layer_num
        h = _bn_lrelu_call(y_pre, scale.reshape(1, cout_p),
                           shift.reshape(1, cout_p), pad_out=pad_out)
        length = l_out
    if layer_num == 0:
        # Corner case: single conv layer, output never needed L padding.
        pass

    # Free flatten: NCL permutation + channel padding are baked into lin_w.
    cp_last = h.shape[-1]
    flat = h.reshape(bsz, final_size * cp_last)
    out = _linear_call(flat, packed["lin_w"], packed["lin_b"])
    return out[:, :latent_size]


# ------------------------------ reference (f32) ------------------------------

def _reference_forward(x, params, data_size, latent_size):
    """Pure-JAX f32 reference matching the PyTorch module's training forward."""
    layer_num = int(math.log2(data_size)) - 3
    h = x[:, None, :]                                            # (B, 1, L) NCL
    for i in range(layer_num + 1):
        w = params[f"conv{i}_w"]
        b = params[f"conv{i}_b"]
        h = jax.lax.conv_general_dilated(
            h, w, window_strides=(2,), padding=((1, 1),),
            dimension_numbers=("NCH", "OIH", "NCH")) + b[None, :, None]
        if i > 0:
            mean = h.mean(axis=(0, 2), keepdims=True)
            var = ((h - mean) ** 2).mean(axis=(0, 2), keepdims=True)
            h = (h - mean) * jax.lax.rsqrt(var + BN_EPS)
            h = h * params[f"bn{i}_g"][None, :, None] + params[f"bn{i}_b"][None, :, None]
        h = jnp.where(h > 0, h, NEG_SLOPE * h)
    flat = h.reshape(h.shape[0], -1)                             # NCL flatten: c*4 + l
    return flat @ params["lin_w"].T + params["lin_b"]


if __name__ == "__main__":
    data_size = 16       # -> layer_num = 1, max_channel = 32, final_size = 4
    input_channel = 1    # forward() unsqueezes a single channel
    latent_size = 8
    batch = 2

    key = jax.random.PRNGKey(0)
    kx, kp = jax.random.split(key)
    x = jax.random.normal(kx, (batch, data_size), jnp.float32)
    raw = init_params(kp, data_size, input_channel, latent_size)
    packed = prepare_params(raw, data_size, latent_size)

    fwd = jax.jit(functools.partial(conv_encoder_forward,
                                    data_size=data_size,
                                    latent_size=latent_size))
    out = jax.block_until_ready(fwd(x, packed))
    assert out.shape == (batch, latent_size), out.shape
    assert bool(jnp.all(jnp.isfinite(out)))

    # Loose parity check vs a pure-JAX f32 reference (bf16 matmul operands and
    # bf16 inter-layer activations => small, expected drift).
    ref = _reference_forward(x, raw, data_size, latent_size)
    err = float(jnp.max(jnp.abs(out - ref)))
    assert err < 0.1, f"max abs err vs f32 reference: {err}"
    print("KERNEL_OK")
</pallas_src>

<mosaic_0001>
module attributes {stable_mosaic.version = 11 : i64} {
  func.func @_conv0_kernel(%arg0: i32, %arg1: memref<2x9x2xf32, #tpu.memory_space<vmem>>, %arg2: memref<4x128xf32, #tpu.memory_space<vmem>>, %arg3: memref<1x128xf32, #tpu.memory_space<vmem>>, %arg4: memref<2x10x128xbf16, #tpu.memory_space<vmem>>) attributes {dimension_semantics = [#tpu.dimension_semantics<parallel>], iteration_bounds = array<i64: 1>, scalar_prefetch = 0 : i64, scratch_operands = 0 : i64, tpu.core_type = #tpu.core_type<tc>, window_params = [{transform_indices = @transform_0, window_bounds = array<i64: 2, 9, 2>}, {pipeline_mode = #tpu.pipeline_mode<synchronous>, transform_indices = @transform_1, window_bounds = array<i64: 4, 128>}, {pipeline_mode = #tpu.pipeline_mode<synchronous>, transform_indices = @transform_2, window_bounds = array<i64: 1, 128>}, {transform_indices = @transform_3, window_bounds = array<i64: 2, 10, 128>}]} {
    %cst = arith.constant 0.000000e+00 : bf16
    %0 = vector.broadcast %cst : bf16 to vector<2x1x128xbf16>
    %c0 = arith.constant 0 : index
    %c0_0 = arith.constant 0 : index
    %c0_1 = arith.constant 0 : index
    %1 = vector.load %arg4[%c0, %c0_0, %c0_1] : memref<2x10x128xbf16, #tpu.memory_space<vmem>>, vector<2x1x128xbf16>
    tpu.vector_store %arg4[%c0, %c0_0, %c0_1], %0 {strides = array<i32>} : memref<2x10x128xbf16, #tpu.memory_space<vmem>>, vector<2x1x128xbf16>,
    %c0_2 = arith.constant 0 : index
    %c9 = arith.constant 9 : index
    %c0_3 = arith.constant 0 : index
    %2 = vector.load %arg4[%c0_2, %c9, %c0_3] : memref<2x10x128xbf16, #tpu.memory_space<vmem>>, vector<2x1x128xbf16>
    tpu.vector_store %arg4[%c0_2, %c9, %c0_3], %0 {strides = array<i32>} : memref<2x10x128xbf16, #tpu.memory_space<vmem>>, vector<2x1x128xbf16>,
    %c0_4 = arith.constant 0 : index
    %c0_5 = arith.constant 0 : index
    %3 = vector.load %arg2[%c0_4, %c0_5] : memref<4x128xf32, #tpu.memory_space<vmem>>, vector<1x128xf32>
    %c1 = arith.constant 1 : index
    %c0_6 = arith.constant 0 : index
    %4 = vector.load %arg2[%c1, %c0_6] : memref<4x128xf32, #tpu.memory_space<vmem>>, vector<1x128xf32>
    %c2 = arith.constant 2 : index
    %c0_7 = arith.constant 0 : index
    %5 = vector.load %arg2[%c2, %c0_7] : memref<4x128xf32, #tpu.memory_space<vmem>>, vector<1x128xf32>
    %c3 = arith.constant 3 : index
    %c0_8 = arith.constant 0 : index
    %6 = vector.load %arg2[%c3, %c0_8] : memref<4x128xf32, #tpu.memory_space<vmem>>, vector<1x128xf32>
    %c0_9 = arith.constant 0 : index
    %c0_10 = arith.constant 0 : index
    %7 = vector.load %arg3[%c0_9, %c0_10] : memref<1x128xf32, #tpu.memory_space<vmem>>, vector<1x128xf32>
    %c0_11 = arith.constant 0 : index
    %c0_12 = arith.constant 0 : index
    %c0_13 = arith.constant 0 : index
    %8 = vector.load %arg1[%c0_11, %c0_12, %c0_13] : memref<2x9x2xf32, #tpu.memory_space<vmem>>, vector<1x8x2xf32>
    %9 = vector.shape_cast %8 : vector<1x8x2xf32> to vector<8x2xf32>
    %c0_14 = arith.constant 0 : index
    %c1_15 = arith.constant 1 : index
    %c0_16 = arith.constant 0 : index
    %10 = vector.load %arg1[%c0_14, %c1_15, %c0_16] : memref<2x9x2xf32, #tpu.memory_space<vmem>>, vector<1x8x2xf32>
    %11 = vector.shape_cast %10 : vector<1x8x2xf32> to vector<8x2xf32>
    %12 = vector.extract_strided_slice %9 {offsets = [0, 0], sizes = [8, 1], strides = [1, 1]} : vector<8x2xf32> to vector<8x1xf32>
    %13 = vector.broadcast %12 : vector<8x1xf32> to vector<8x128xf32>
    %14 = vector.broadcast %3 : vector<1x128xf32> to vector<8x128xf32>
    %15 = arith.mulf %13, %14 : vector<8x128xf32>
    %16 = vector.extract_strided_slice %9 {offsets = [0, 1], sizes = [8, 1], strides = [1, 1]} : vector<8x2xf32> to vector<8x1xf32>
    %17 = vector.broadcast %16 : vector<8x1xf32> to vector<8x128xf32>
    %18 = vector.broadcast %4 : vector<1x128xf32> to vector<8x128xf32>
    %19 = arith.mulf %17, %18 : vector<8x128xf32>
    %20 = arith.addf %15, %19 : vector<8x128xf32>
    %21 = vector.extract_strided_slice %11 {offsets = [0, 0], sizes = [8, 1], strides = [1, 1]} : vector<8x2xf32> to vector<8x1xf32>
    %22 = vector.broadcast %21 : vector<8x1xf32> to vector<8x128xf32>
    %23 = vector.broadcast %5 : vector<1x128xf32> to vector<8x128xf32>
    %24 = arith.mulf %22, %23 : vector<8x128xf32>
    %25 = arith.addf %20, %24 : vector<8x128xf32>
    %26 = vector.extract_strided_slice %11 {offsets = [0, 1], sizes = [8, 1], strides = [1, 1]} : vector<8x2xf32> to vector<8x1xf32>
    %27 = vector.broadcast %26 : vector<8x1xf32> to vector<8x128xf32>
    %28 = vector.broadcast %6 : vector<1x128xf32> to vector<8x128xf32>
    %29 = arith.mulf %27, %28 : vector<8x128xf32>
    %30 = arith.addf %25, %29 : vector<8x128xf32>
    %31 = vector.broadcast %7 : vector<1x128xf32> to vector<8x128xf32>
    %32 = arith.addf %30, %31 : vector<8x128xf32>
    %cst_17 = arith.constant 0.000000e+00 : f32
    %33 = vector.broadcast %cst_17 : f32 to vector<8x128xf32>
    %34 = arith.cmpf ogt, %32, %33 : vector<8x128xf32>
    %cst_18 = arith.constant 2.000000e-01 : f32
    %35 = vector.broadcast %cst_18 : f32 to vector<8x128xf32>
    %36 = arith.mulf %35, %32 : vector<8x128xf32>
    %37 = arith.select %34, %32, %36 : vector<8x128xi1>, vector<8x128xf32>
    %38 = arith.truncf %37 : vector<8x128xf32> to vector<8x128xbf16>
    %c0_19 = arith.constant 0 : index
    %c1_20 = arith.constant 1 : index
    %c0_21 = arith.constant 0 : index
    %39 = vector.load %arg4[%c0_19, %c1_20, %c0_21] : memref<2x10x128xbf16, #tpu.memory_space<vmem>>, vector<1x8x128xbf16>
    %40 = vector.shape_cast %39 : vector<1x8x128xbf16> to vector<8x128xbf16>
    %41 = vector.shape_cast %38 : vector<8x128xbf16> to vector<1x8x128xbf16>
    tpu.vector_store %arg4[%c0_19, %c1_20, %c0_21], %41 {strides = array<i32>} : memref<2x10x128xbf16, #tpu.memory_space<vmem>>, vector<1x8x128xbf16>,
    %c1_22 = arith.constant 1 : index
    %c0_23 = arith.constant 0 : index
    %c0_24 = arith.constant 0 : index
    %42 = vector.load %arg1[%c1_22, %c0_23, %c0_24] : memref<2x9x2xf32, #tpu.memory_space<vmem>>, vector<1x8x2xf32>
    %43 = vector.shape_cast %42 : vector<1x8x2xf32> to vector<8x2xf32>
    %c1_25 = arith.constant 1 : index
    %c1_26 = arith.constant 1 : index
    %c0_27 = arith.constant 0 : index
    %44 = vector.load %arg1[%c1_25, %c1_26, %c0_27] : memref<2x9x2xf32, #tpu.memory_space<vmem>>, vector<1x8x2xf32>
    %45 = vector.shape_cast %44 : vector<1x8x2xf32> to vector<8x2xf32>
    %46 = vector.extract_strided_slice %43 {offsets = [0, 0], sizes = [8, 1], strides = [1, 1]} : vector<8x2xf32> to vector<8x1xf32>
    %47 = vector.broadcast %46 : vector<8x1xf32> to vector<8x128xf32>
    %48 = vector.broadcast %3 : vector<1x128xf32> to vector<8x128xf32>
    %49 = arith.mulf %47, %48 : vector<8x128xf32>
    %50 = vector.extract_strided_slice %43 {offsets = [0, 1], sizes = [8, 1], strides = [1, 1]} : vector<8x2xf32> to vector<8x1xf32>
    %51 = vector.broadcast %50 : vector<8x1xf32> to vector<8x128xf32>
    %52 = vector.broadcast %4 : vector<1x128xf32> to vector<8x128xf32>
    %53 = arith.mulf %51, %52 : vector<8x128xf32>
    %54 = arith.addf %49, %53 : vector<8x128xf32>
    %55 = vector.extract_strided_slice %45 {offsets = [0, 0], sizes = [8, 1], strides = [1, 1]} : vector<8x2xf32> to vector<8x1xf32>
    %56 = vector.broadcast %55 : vector<8x1xf32> to vector<8x128xf32>
    %57 = vector.broadcast %5 : vector<1x128xf32> to vector<8x128xf32>
    %58 = arith.mulf %56, %57 : vector<8x128xf32>
    %59 = arith.addf %54, %58 : vector<8x128xf32>
    %60 = vector.extract_strided_slice %45 {offsets = [0, 1], sizes = [8, 1], strides = [1, 1]} : vector<8x2xf32> to vector<8x1xf32>
    %61 = vector.broadcast %60 : vector<8x1xf32> to vector<8x128xf32>
    %62 = vector.broadcast %6 : vector<1x128xf32> to vector<8x128xf32>
    %63 = arith.mulf %61, %62 : vector<8x128xf32>
    %64 = arith.addf %59, %63 : vector<8x128xf32>
    %65 = vector.broadcast %7 : vector<1x128xf32> to vector<8x128xf32>
    %66 = arith.addf %64, %65 : vector<8x128xf32>
    %cst_28 = arith.constant 0.000000e+00 : f32
    %67 = vector.broadcast %cst_28 : f32 to vector<8x128xf32>
    %68 = arith.cmpf ogt, %66, %67 : vector<8x128xf32>
    %cst_29 = arith.constant 2.000000e-01 : f32
    %69 = vector.broadcast %cst_29 : f32 to vector<8x128xf32>
    %70 = arith.mulf %69, %66 : vector<8x128xf32>
    %71 = arith.select %68, %66, %70 : vector<8x128xi1>, vector<8x128xf32>
    %72 = arith.truncf %71 : vector<8x128xf32> to vector<8x128xbf16>
    %c1_30 = arith.constant 1 : index
    %c1_31 = arith.constant 1 : index
    %c0_32 = arith.constant 0 : index
    %73 = vector.load %arg4[%c1_30, %c1_31, %c0_32] : memref<2x10x128xbf16, #tpu.memory_space<vmem>>, vector<1x8x128xbf16>
    %74 = vector.shape_cast %73 : vector<1x8x128xbf16> to vector<8x128xbf16>
    %75 = vector.shape_cast %72 : vector<8x128xbf16> to vector<1x8x128xbf16>
    tpu.vector_store %arg4[%c1_30, %c1_31, %c0_32], %75 {strides = array<i32>} : memref<2x10x128xbf16, #tpu.memory_space<vmem>>, vector<1x8x128xbf16>,
    return
  }
  func.func @transform_0(%arg0: i32) -> (i32, i32, i32) {
    %c0_i32 = arith.constant 0 : i32
    %c0_i32_0 = arith.constant 0 : i32
    %c0_i32_1 = arith.constant 0 : i32
    return %arg0, %c0_i32, %c0_i32_0 : i32, i32, i32
  }
  func.func @transform_1(%arg0: i32) -> (i32, i32) {
    %c0_i32 = arith.constant 0 : i32
    %c0_i32_0 = arith.constant 0 : i32
    %c0_i32_1 = arith.constant 0 : i32
    return %c0_i32, %c0_i32_0 : i32, i32
  }
  func.func @transform_2(%arg0: i32) -> (i32, i32) {
    %c0_i32 = arith.constant 0 : i32
    %c0_i32_0 = arith.constant 0 : i32
    %c0_i32_1 = arith.constant 0 : i32
    return %c0_i32, %c0_i32_0 : i32, i32
  }
  func.func @transform_3(%arg0: i32) -> (i32, i32, i32) {
    %c0_i32 = arith.constant 0 : i32
    %c0_i32_0 = arith.constant 0 : i32
    %c0_i32_1 = arith.constant 0 : i32
    return %arg0, %c0_i32, %c0_i32_0 : i32, i32, i32
  }
}

module attributes {stable_mosaic.version = 11 : i64} {
  func.func @_conv_pass1_kernel(%arg0: i32, %arg1: memref<2x5x256xbf16, #tpu.memory_space<vmem>>, %arg2: memref<256x128xbf16, #tpu.memory_space<vmem>>, %arg3: memref<256x128xbf16, #tpu.memory_space<vmem>>, %arg4: memref<2x4x128xbf16, #tpu.memory_space<vmem>>, %arg5: memref<1x2x128xf32, #tpu.memory_space<vmem>>) attributes {dimension_semantics = [#tpu.dimension_semantics<parallel>], iteration_bounds = array<i64: 1>, scalar_prefetch = 0 : i64, scratch_operands = 0 : i64, tpu.core_type = #tpu.core_type<tc>, window_params = [{transform_indices = @transform_0, window_bounds = array<i64: 2, 5, 256>}, {pipeline_mode = #tpu.pipeline_mode<synchronous>, transform_indices = @transform_1, window_bounds = array<i64: 256, 128>}, {pipeline_mode = #tpu.pipeline_mode<synchronous>, transform_indices = @transform_2, window_bounds = array<i64: 256, 128>}, {transform_indices = @transform_3, window_bounds = array<i64: 2, 4, 128>}, {transform_indices = @transform_4, window_bounds = array<i64: 1, 2, 128>}]} {
    %c0 = arith.constant 0 : index
    %c0_0 = arith.constant 0 : index
    %0 = vector.load %arg2[%c0, %c0_0] : memref<256x128xbf16, #tpu.memory_space<vmem>>, vector<256x128xbf16>
    %c0_1 = arith.constant 0 : index
    %c0_2 = arith.constant 0 : index
    %1 = vector.load %arg3[%c0_1, %c0_2] : memref<256x128xbf16, #tpu.memory_space<vmem>>, vector<256x128xbf16>
    %cst = arith.constant 0.000000e+00 : f32
    %2 = vector.broadcast %cst : f32 to vector<1x128xf32>
    %cst_3 = arith.constant 0.000000e+00 : f32
    %3 = vector.broadcast %cst_3 : f32 to vector<1x128xf32>
    %c0_4 = arith.constant 0 : index
    %c0_5 = arith.constant 0 : index
    %c0_6 = arith.constant 0 : index
    %4 = vector.load %arg1[%c0_4, %c0_5, %c0_6] : memref<2x5x256xbf16, #tpu.memory_space<vmem>>, vector<1x4x256xbf16>
    %5 = vector.shape_cast %4 : vector<1x4x256xbf16> to vector<4x256xbf16>
    %c0_7 = arith.constant 0 : index
    %c1 = arith.constant 1 : index
    %c0_8 = arith.constant 0 : index
    %6 = vector.load %arg1[%c0_7, %c1, %c0_8] : memref<2x5x256xbf16, #tpu.memory_space<vmem>>, vector<1x4x256xbf16>
    %7 = vector.shape_cast %6 : vector<1x4x256xbf16> to vector<4x256xbf16>
    %cst_9 = arith.constant dense<0.000000e+00> : vector<4x128xf32>
    %8 = tpu.matmul %5, %0, %cst_9 {dimension_numbers = #tpu.dot_dimension_numbers<[1], [0], [0], [1], [0, 0, 1, 1], [], []>} : vector<4x256xbf16>, vector<256x128xbf16>, vector<4x128xf32> -> vector<4x128xf32>
    %cst_10 = arith.constant dense<0.000000e+00> : vector<4x128xf32>
    %9 = tpu.matmul %7, %1, %cst_10 {dimension_numbers = #tpu.dot_dimension_numbers<[1], [0], [0], [1], [0, 0, 1, 1], [], []>} : vector<4x256xbf16>, vector<256x128xbf16>, vector<4x128xf32> -> vector<4x128xf32>
    %10 = arith.addf %8, %9 : vector<4x128xf32>
    %cst_11 = arith.constant dense<0.000000e+00> : vector<128xf32>
    %11 = vector.multi_reduction <add>, %10, %cst_11 [0] : vector<4x128xf32> to vector<128xf32>
    %12 = vector.shape_cast %11 : vector<128xf32> to vector<1x128xf32>
    %13 = arith.addf %2, %12 : vector<1x128xf32>
    %14 = arith.mulf %10, %10 : vector<4x128xf32>
    %cst_12 = arith.constant dense<0.000000e+00> : vector<128xf32>
    %15 = vector.multi_reduction <add>, %14, %cst_12 [0] : vector<4x128xf32> to vector<128xf32>
    %16 = vector.shape_cast %15 : vector<128xf32> to vector<1x128xf32>
    %17 = arith.addf %3, %16 : vector<1x128xf32>
    %18 = arith.truncf %10 : vector<4x128xf32> to vector<4x128xbf16>
    %c0_13 = arith.constant 0 : index
    %c0_14 = arith.constant 0 : index
    %c0_15 = arith.constant 0 : index
    %19 = vector.load %arg4[%c0_13, %c0_14, %c0_15] : memref<2x4x128xbf16, #tpu.memory_space<vmem>>, vector<1x4x128xbf16>
    %20 = vector.shape_cast %19 : vector<1x4x128xbf16> to vector<4x128xbf16>
    %21 = vector.shape_cast %18 : vector<4x128xbf16> to vector<1x4x128xbf16>
    tpu.vector_store %arg4[%c0_13, %c0_14, %c0_15], %21 {strides = array<i32>} : memref<2x4x128xbf16, #tpu.memory_space<vmem>>, vector<1x4x128xbf16>,
    %c1_16 = arith.constant 1 : index
    %c0_17 = arith.constant 0 : index
    %c0_18 = arith.constant 0 : index
    %22 = vector.load %arg1[%c1_16, %c0_17, %c0_18] : memref<2x5x256xbf16, #tpu.memory_space<vmem>>, vector<1x4x256xbf16>
    %23 = vector.shape_cast %22 : vector<1x4x256xbf16> to vector<4x256xbf16>
    %c1_19 = arith.constant 1 : index
    %c1_20 = arith.constant 1 : index
    %c0_21 = arith.constant 0 : index
    %24 = vector.load %arg1[%c1_19, %c1_20, %c0_21] : memref<2x5x256xbf16, #tpu.memory_space<vmem>>, vector<1x4x256xbf16>
    %25 = vector.shape_cast %24 : vector<1x4x256xbf16> to vector<4x256xbf16>
    %cst_22 = arith.constant dense<0.000000e+00> : vector<4x128xf32>
    %26 = tpu.matmul %23, %0, %cst_22 {dimension_numbers = #tpu.dot_dimension_numbers<[1], [0], [0], [1], [0, 0, 1, 1], [], []>} : vector<4x256xbf16>, vector<256x128xbf16>, vector<4x128xf32> -> vector<4x128xf32>
    %cst_23 = arith.constant dense<0.000000e+00> : vector<4x128xf32>
    %27 = tpu.matmul %25, %1, %cst_23 {dimension_numbers = #tpu.dot_dimension_numbers<[1], [0], [0], [1], [0, 0, 1, 1], [], []>} : vector<4x256xbf16>, vector<256x128xbf16>, vector<4x128xf32> -> vector<4x128xf32>
    %28 = arith.addf %26, %27 : vector<4x128xf32>
    %cst_24 = arith.constant dense<0.000000e+00> : vector<128xf32>
    %29 = vector.multi_reduction <add>, %28, %cst_24 [0] : vector<4x128xf32> to vector<128xf32>
    %30 = vector.shape_cast %29 : vector<128xf32> to vector<1x128xf32>
    %31 = arith.addf %13, %30 : vector<1x128xf32>
    %32 = arith.mulf %28, %28 : vector<4x128xf32>
    %cst_25 = arith.constant dense<0.000000e+00> : vector<128xf32>
    %33 = vector.multi_reduction <add>, %32, %cst_25 [0] : vector<4x128xf32> to vector<128xf32>
    %34 = vector.shape_cast %33 : vector<128xf32> to vector<1x128xf32>
    %35 = arith.addf %17, %34 : vector<1x128xf32>
    %36 = arith.truncf %28 : vector<4x128xf32> to vector<4x128xbf16>
    %c1_26 = arith.constant 1 : index
    %c0_27 = arith.constant 0 : index
    %c0_28 = arith.constant 0 : index
    %37 = vector.load %arg4[%c1_26, %c0_27, %c0_28] : memref<2x4x128xbf16, #tpu.memory_space<vmem>>, vector<1x4x128xbf16>
    %38 = vector.shape_cast %37 : vector<1x4x128xbf16> to vector<4x128xbf16>
    %39 = vector.shape_cast %36 : vector<4x128xbf16> to vector<1x4x128xbf16>
    tpu.vector_store %arg4[%c1_26, %c0_27, %c0_28], %39 {strides = array<i32>} : memref<2x4x128xbf16, #tpu.memory_space<vmem>>, vector<1x4x128xbf16>,
    %40 = tpu.concatenate %31, %35 in 0 : vector<1x128xf32>, vector<1x128xf32> -> vector<2x128xf32>
    %c0_29 = arith.constant 0 : index
    %c0_30 = arith.constant 0 : index
    %c0_31 = arith.constant 0 : index
    %41 = vector.load %arg5[%c0_29, %c0_30, %c0_31] : memref<1x2x128xf32, #tpu.memory_space<vmem>>, vector<1x2x128xf32>
    %42 = vector.shape_cast %41 : vector<1x2x128xf32> to vector<2x128xf32>
    %43 = vector.shape_cast %40 : vector<2x128xf32> to vector<1x2x128xf32>
    tpu.vector_store %arg5[%c0_29, %c0_30, %c0_31], %43 {strides = array<i32>} : memref<1x2x128xf32, #tpu.memory_space<vmem>>, vector<1x2x128xf32>,
    return
  }
  func.func @transform_0(%arg0: i32) -> (i32, i32, i32) {
    %c0_i32 = arith.constant 0 : i32
    %c0_i32_0 = arith.constant 0 : i32
    %c0_i32_1 = arith.constant 0 : i32
    return %arg0, %c0_i32, %c0_i32_0 : i32, i32, i32
  }
  func.func @transform_1(%arg0: i32) -> (i32, i32) {
    %c0_i32 = arith.constant 0 : i32
    %c0_i32_0 = arith.constant 0 : i32
    %c0_i32_1 = arith.constant 0 : i32
    return %c0_i32, %c0_i32_0 : i32, i32
  }
  func.func @transform_2(%arg0: i32) -> (i32, i32) {
    %c0_i32 = arith.constant 0 : i32
    %c0_i32_0 = arith.constant 0 : i32
    %c0_i32_1 = arith.constant 0 : i32
    return %c0_i32, %c0_i32_0 : i32, i32
  }
  func.func @transform_3(%arg0: i32) -> (i32, i32, i32) {
    %c0_i32 = arith.constant 0 : i32
    %c0_i32_0 = arith.constant 0 : i32
    %c0_i32_1 = arith.constant 0 : i32
    return %arg0, %c0_i32, %c0_i32_0 : i32, i32, i32
  }
  func.func @transform_4(%arg0: i32) -> (i32, i32, i32) {
    %c0_i32 = arith.constant 0 : i32
    %c0_i32_0 = arith.constant 0 : i32
    %c0_i32_1 = arith.constant 0 : i32
    return %arg0, %c0_i32, %c0_i32_0 : i32, i32, i32
  }
}

module attributes {stable_mosaic.version = 11 : i64} {
  func.func @_bn_lrelu_kernel(%arg0: i32, %arg1: memref<2x4x128xbf16, #tpu.memory_space<vmem>>, %arg2: memref<1x128xf32, #tpu.memory_space<vmem>>, %arg3: memref<1x128xf32, #tpu.memory_space<vmem>>, %arg4: memref<2x4x128xbf16, #tpu.memory_space<vmem>>) attributes {dimension_semantics = [#tpu.dimension_semantics<parallel>], iteration_bounds = array<i64: 1>, scalar_prefetch = 0 : i64, scratch_operands = 0 : i64, tpu.core_type = #tpu.core_type<tc>, window_params = [{transform_indices = @transform_0, window_bounds = array<i64: 2, 4, 128>}, {pipeline_mode = #tpu.pipeline_mode<synchronous>, transform_indices = @transform_1, window_bounds = array<i64: 1, 128>}, {pipeline_mode = #tpu.pipeline_mode<synchronous>, transform_indices = @transform_2, window_bounds = array<i64: 1, 128>}, {transform_indices = @transform_3, window_bounds = array<i64: 2, 4, 128>}]} {
    %c0 = arith.constant 0 : index
    %c0_0 = arith.constant 0 : index
    %c0_1 = arith.constant 0 : index
    %0 = vector.load %arg1[%c0, %c0_0, %c0_1] : memref<2x4x128xbf16, #tpu.memory_space<vmem>>, vector<2x4x128xbf16>
    %1 = arith.extf %0 : vector<2x4x128xbf16> to vector<2x4x128xf32>
    %c0_2 = arith.constant 0 : index
    %c0_3 = arith.constant 0 : index
    %2 = vector.load %arg2[%c0_2, %c0_3] : memref<1x128xf32, #tpu.memory_space<vmem>>, vector<1x128xf32>
    %3 = vector.shape_cast %2 : vector<1x128xf32> to vector<1x1x128xf32>
    %4 = vector.broadcast %3 : vector<1x1x128xf32> to vector<2x4x128xf32>
    %5 = arith.mulf %1, %4 : vector<2x4x128xf32>
    %c0_4 = arith.constant 0 : index
    %c0_5 = arith.constant 0 : index
    %6 = vector.load %arg3[%c0_4, %c0_5] : memref<1x128xf32, #tpu.memory_space<vmem>>, vector<1x128xf32>
    %7 = vector.shape_cast %6 : vector<1x128xf32> to vector<1x1x128xf32>
    %8 = vector.broadcast %7 : vector<1x1x128xf32> to vector<2x4x128xf32>
    %9 = arith.addf %5, %8 : vector<2x4x128xf32>
    %cst = arith.constant 0.000000e+00 : f32
    %10 = vector.broadcast %cst : f32 to vector<2x4x128xf32>
    %11 = arith.cmpf ogt, %9, %10 : vector<2x4x128xf32>
    %cst_6 = arith.constant 2.000000e-01 : f32
    %12 = vector.broadcast %cst_6 : f32 to vector<2x4x128xf32>
    %13 = arith.mulf %12, %9 : vector<2x4x128xf32>
    %14 = arith.select %11, %9, %13 : vector<2x4x128xi1>, vector<2x4x128xf32>
    %15 = arith.truncf %14 : vector<2x4x128xf32> to vector<2x4x128xbf16>
    %c0_7 = arith.constant 0 : index
    %c0_8 = arith.constant 0 : index
    %c0_9 = arith.constant 0 : index
    %16 = vector.load %arg4[%c0_7, %c0_8, %c0_9] : memref<2x4x128xbf16, #tpu.memory_space<vmem>>, vector<2x4x128xbf16>
    tpu.vector_store %arg4[%c0_7, %c0_8, %c0_9], %15 {strides = array<i32>} : memref<2x4x128xbf16, #tpu.memory_space<vmem>>, vector<2x4x128xbf16>,
    return
  }
  func.func @transform_0(%arg0: i32) -> (i32, i32, i32) {
    %c0_i32 = arith.constant 0 : i32
    %c0_i32_0 = arith.constant 0 : i32
    %c0_i32_1 = arith.constant 0 : i32
    return %arg0, %c0_i32, %c0_i32_0 : i32, i32, i32
  }
  func.func @transform_1(%arg0: i32) -> (i32, i32) {
    %c0_i32 = arith.constant 0 : i32
    %c0_i32_0 = arith.constant 0 : i32
    %c0_i32_1 = arith.constant 0 : i32
    return %c0_i32, %c0_i32_0 : i32, i32
  }
  func.func @transform_2(%arg0: i32) -> (i32, i32) {
    %c0_i32 = arith.constant 0 : i32
    %c0_i32_0 = arith.constant 0 : i32
    %c0_i32_1 = arith.constant 0 : i32
    return %c0_i32, %c0_i32_0 : i32, i32
  }
  func.func @transform_3(%arg0: i32) -> (i32, i32, i32) {
    %c0_i32 = arith.constant 0 : i32
    %c0_i32_0 = arith.constant 0 : i32
    %c0_i32_1 = arith.constant 0 : i32
    return %arg0, %c0_i32, %c0_i32_0 : i32, i32, i32
  }
}

module attributes {stable_mosaic.version = 11 : i64} {
  func.func @_linear_kernel(%arg0: i32, %arg1: memref<2x512xbf16, #tpu.memory_space<vmem>>, %arg2: memref<512x128xbf16, #tpu.memory_space<vmem>>, %arg3: memref<1x128xf32, #tpu.memory_space<vmem>>, %arg4: memref<2x128xf32, #tpu.memory_space<vmem>>) attributes {dimension_semantics = [#tpu.dimension_semantics<parallel>], iteration_bounds = array<i64: 1>, scalar_prefetch = 0 : i64, scratch_operands = 0 : i64, tpu.core_type = #tpu.core_type<tc>, window_params = [{transform_indices = @transform_0, window_bounds = array<i64: 2, 512>}, {pipeline_mode = #tpu.pipeline_mode<synchronous>, transform_indices = @transform_1, window_bounds = array<i64: 512, 128>}, {pipeline_mode = #tpu.pipeline_mode<synchronous>, transform_indices = @transform_2, window_bounds = array<i64: 1, 128>}, {transform_indices = @transform_3, window_bounds = array<i64: 2, 128>}]} {
    %c0 = arith.constant 0 : index
    %c0_0 = arith.constant 0 : index
    %0 = vector.load %arg1[%c0, %c0_0] : memref<2x512xbf16, #tpu.memory_space<vmem>>, vector<2x512xbf16>
    %c0_1 = arith.constant 0 : index
    %c0_2 = arith.constant 0 : index
    %1 = vector.load %arg2[%c0_1, %c0_2] : memref<512x128xbf16, #tpu.memory_space<vmem>>, vector<512x128xbf16>
    %cst = arith.constant dense<0.000000e+00> : vector<2x128xf32>
    %2 = tpu.matmul %0, %1, %cst {dimension_numbers = #tpu.dot_dimension_numbers<[1], [0], [0], [1], [0, 0, 1, 1], [], []>} : vector<2x512xbf16>, vector<512x128xbf16>, vector<2x128xf32> -> vector<2x128xf32>
    %c0_3 = arith.constant 0 : index
    %c0_4 = arith.constant 0 : index
    %3 = vector.load %arg3[%c0_3, %c0_4] : memref<1x128xf32, #tpu.memory_space<vmem>>, vector<1x128xf32>
    %4 = vector.broadcast %3 : vector<1x128xf32> to vector<2x128xf32>
    %5 = arith.addf %2, %4 : vector<2x128xf32>
    %c0_5 = arith.constant 0 : index
    %c0_6 = arith.constant 0 : index
    %6 = vector.load %arg4[%c0_5, %c0_6] : memref<2x128xf32, #tpu.memory_space<vmem>>, vector<2x128xf32>
    tpu.vector_store %arg4[%c0_5, %c0_6], %5 {strides = array<i32>} : memref<2x128xf32, #tpu.memory_space<vmem>>, vector<2x128xf32>,
    return
  }
  func.func @transform_0(%arg0: i32) -> (i32, i32) {
    %c0_i32 = arith.constant 0 : i32
    %c0_i32_0 = arith.constant 0 : i32
    return %arg0, %c0_i32 : i32, i32
  }
  func.func @transform_1(%arg0: i32) -> (i32, i32) {
    %c0_i32 = arith.constant 0 : i32
    %c0_i32_0 = arith.constant 0 : i32
    %c0_i32_1 = arith.constant 0 : i32
    return %c0_i32, %c0_i32_0 : i32, i32
  }
  func.func @transform_2(%arg0: i32) -> (i32, i32) {
    %c0_i32 = arith.constant 0 : i32
    %c0_i32_0 = arith.constant 0 : i32
    %c0_i32_1 = arith.constant 0 : i32
    return %c0_i32, %c0_i32_0 : i32, i32
  }
  func.func @transform_3(%arg0: i32) -> (i32, i32) {
    %c0_i32 = arith.constant 0 : i32
    %c0_i32_0 = arith.constant 0 : i32
    return %arg0, %c0_i32 : i32, i32
  }
}

</mosaic_0001>

<llo_original>
// kernel: conv_encoder_forward.4
$region0: #{conv_encoder_forward.4}
  #allocation0 [shape = 'u32[]', space=smem, size = 0x4, offset = 0x4, fixed_abs, tag = 'smem constant byte address 0x4 - core index']
  #allocation1 [shape = 'u32[144,128]{1,0:T(1,128)}', space=vmem, size = 0x12000, scoped, tag = 'internal scratch']
  %s0 = inlined_call_operand.vmem [shape: f32[2,9,2], index: 0, kind: input, shape index: {}]
  %s1 = inlined_call_operand.hbm [shape: f32[4,128], index: 1, kind: input, shape index: {}]
  %s2 = inlined_call_operand.hbm [shape: f32[1,128], index: 2, kind: input, shape index: {}]
  %s3 = inlined_call_operand.vmem [shape: bf16[2,10,128], index: 3, kind: output, shape index: {}]
  %s4 = sld [smem:[#allocation0]]
  $region30: #{conv_encoder_forward.4} parent=0
    _
  %s6 = ssub.s32 1, %s4
  %s7 = scalar_select 0, %s6, %s4
  $region1: #{conv_encoder_forward.4} parent=0
    #allocation2 [shape = 'u8[2048]{0}', space=vmem, size = 0x800, scoped, tag = 'input window, operand 1, single buffered']
    #allocation3 [shape = 's32[1]{0}', space=sflag, size = 0x4, scoped, tag = 'scoped memory for conv_encoder_forward.4']
    #allocation4 [shape = 'u8[512]{0}', space=vmem, size = 0x400, scoped, tag = 'input window, operand 2, single buffered']
    #allocation5 [shape = 's32[1]{0}', space=sflag, size = 0x4, scoped, tag = 'scoped memory for conv_encoder_forward.4']
    %8 = vsyncpa [#allocation3], 0
    %9 = vsyncpa [#allocation5], 0
    // Predicated region
    $region2: #{conv_encoder_forward.4} parent=1 // pred_check
      _
    $region3: #{conv_encoder_forward.4} parent=1 // pred_check_branch
      %11 = sbr.rel (0) target = $region5
    $region4: #{conv_encoder_forward.4} parent=1 // pred_region
      _
    $region5: #{conv_encoder_forward.4} parent=1 // pred_fallthru
      _
    // Predicated region
    $region6: #{conv_encoder_forward.4} parent=1 // pred_check
      _
    $region7: #{conv_encoder_forward.4} parent=1 // pred_check_branch
      %13 = sbr.rel (0) target = $region9
    $region8: #{conv_encoder_forward.4} parent=1 // pred_region
      %s15 = ssub.s32 64, 64
      %16 = vsyncadd [#allocation3], %s15
      %s18 = sshll.u32 [#allocation2], 4
      %s19 = int_to_ptr.vmem [resolvable:$true] %s18
      %21 = dma.hbm_to_vmem [thread:$0]  %s1, 64, %s19, [#allocation3]
    $region9: #{conv_encoder_forward.4} parent=1 // pred_fallthru
      _
    // Predicated region
    $region10: #{conv_encoder_forward.4} parent=1 // pred_check
      _
    $region11: #{conv_encoder_forward.4} parent=1 // pred_check_branch
      %23 = sbr.rel (0) target = $region13
    $region12: #{conv_encoder_forward.4} parent=1 // pred_region
      %s25 = ssub.s32 16, 16
      %26 = vsyncadd [#allocation5], %s25
      %s28 = sshll.u32 [#allocation4], 4
      %s29 = int_to_ptr.vmem [resolvable:$true] %s28
      %31 = dma.hbm_to_vmem [thread:$0]  %s2, 16, %s29, [#allocation5]
    $region13: #{conv_encoder_forward.4} parent=1 // pred_fallthru
      _
    // Predicated region
    $region14: #{conv_encoder_forward.4} parent=1 // pred_check
      _
    $region15: #{conv_encoder_forward.4} parent=1 // pred_check_branch
      %33 = sbr.rel (0) target = $region17
    $region16: #{conv_encoder_forward.4} parent=1 // pred_region
      %34 = dma.done [#allocation3], 64
    $region17: #{conv_encoder_forward.4} parent=1 // pred_fallthru
      _
    // Predicated region
    $region18: #{conv_encoder_forward.4} parent=1 // pred_check
      _
    $region19: #{conv_encoder_forward.4} parent=1 // pred_check_branch
      %36 = sbr.rel (0) target = $region21
    $region20: #{conv_encoder_forward.4} parent=1 // pred_region
      %37 = dma.done [#allocation5], 16
    $region21: #{conv_encoder_forward.4} parent=1 // pred_fallthru
      _
    %vm39 = vcmask 1040384
    %vm40 = vsmask.f32 256
    %vm41 = vmand %vm39, %vm40
    %v42 = vld [vmem:[%s3] sm:$0x1]
    %v43 = vsel %vm41, 0, %v42
    %44 = vst [vmem:[%s3] sm:$0x1] %v43
    %v45 = vld [vmem:[%s3 + $0x8] sm:$0x1]
    %v46 = vsel %vm41, 0, %v45
    %47 = vst [vmem:[%s3 + $0x8] sm:$0x1] %v46
    %vm48 = vsmask.f32 7938
    %vm49 = vmand %vm39, %vm48
    %v50 = vld [vmem:[%s3 + $0x4] sm:$0x1]
    %v51 = vsel %vm49, 0, %v50
    %52 = vst [vmem:[%s3 + $0x4] sm:$0x1] %v51
    %v53 = vld [vmem:[%s3 + $0xc] sm:$0x1]
    %v54 = vsel %vm49, 0, %v53
    %55 = vst [vmem:[%s3 + $0xc] sm:$0x1] %v54
    %v56 = vld [vmem:[#allocation2] sm:$0x1]
    %v57 = vld [vmem:[#allocation2 + $0x1] sm:$0x1]
    %v58 = vld [vmem:[#allocation2 + $0x2] sm:$0x1]
    %v59 = vld [vmem:[#allocation2 + $0x3] sm:$0x1]
    %v60 = vld [vmem:[#allocation4] sm:$0x1]
    %v61 = vld [vmem:[%s0] sm:$0xff]
    %v62 = vld [vmem:[%s0 + $0x1] sm:$0xff]
    %64 = vset.pattern.permute.xlu0 0
    %65 = vperm.xlu0 %64, %v61
    %v66 = vpop.permute.xlu0 %65
    %v68 = vlaneseq
    %v69 = vshrl.u32 %v68, 7
    %v70 = vsub.s32 0, %v69
    %v71 = vrot.slane %v56, %v70
    %v72 = vmul.f32 %v66, %v71
    %73 = vset.pattern.permute.xlu0 1
    %74 = vperm.xlu0 %73, %v61
    %v75 = vpop.permute.xlu0 %74
    %v77 = vlaneseq
    %v78 = vshrl.u32 %v77, 7
    %v79 = vsub.s32 0, %v78
    %v80 = vrot.slane %v57, %v79
    %v81 = vmul.f32 %v75, %v80
    %v82 = vadd.f32 %v72, %v81
    %84 = vset.pattern.permute.xlu0 0
    %85 = vperm.xlu0 %84, %v62
    %v86 = vpop.permute.xlu0 %85
    %v88 = vlaneseq
    %v89 = vshrl.u32 %v88, 7
    %v90 = vsub.s32 0, %v89
    %v91 = vrot.slane %v58, %v90
    %v92 = vmul.f32 %v86, %v91
    %v93 = vadd.f32 %v82, %v92
    %94 = vset.pattern.permute.xlu0 1
    %95 = vperm.xlu0 %94, %v62
    %v96 = vpop.permute.xlu0 %95
    %v98 = vlaneseq
    %v99 = vshrl.u32 %v98, 7
    %v100 = vsub.s32 0, %v99
    %v101 = vrot.slane %v59, %v100
    %v102 = vmul.f32 %v96, %v101
    %v103 = vadd.f32 %v93, %v102
    %v105 = vlaneseq
    %v106 = vshrl.u32 %v105, 7
    %v107 = vsub.s32 0, %v106
    %v108 = vrot.slane %v60, %v107
    %v110 = vadd.f32 %v103, %v108
    %vm111 = vcmp.gt.f32.partialorder %v110, 0.0
    %v112 = vmul.f32 %v110, 0.2
    %v113 = vsel %vm111, %v110, %v112
    %v114 = vpack.c.bf16 %v113, %v113
    %v116 = vunpack.c.l.b16 %v114
    %v117 = vpack.c.b16 %v116, %v116
    %v119 = vshrl.u32 %v117, 16
    %v121 = vrot.slane %v119, 7
    %v122 = vshll.u32 %v117, 16
    %v124 = vor.u32 %v121, %v122
    %v125 = vrot.slane %v121, 4
    %vm128 = vcmask 1043456
    %vm129 = vmand %vm128, %vm48
    %v130 = vld [vmem:[%s3] sm:$0xf]
    %v131 = vsel %vm129, %v124, %v130
    %132 = vst [vmem:[%s3] sm:$0xf] %v131
    %v133 = vld [vmem:[%s3 + $0x4] sm:$0x1]
    %v134 = vsel %vm41, %v125, %v133
    %135 = vst [vmem:[%s3 + $0x4] sm:$0x1] %v134
    %s136 = scalar_lea.vmem %s0, 16
    %v137 = vld [vmem:[%s136] sm:$0xff]
    %v138 = vld [vmem:[%s136 + $0x1] sm:$0xff]
    %140 = vset.pattern.permute.xlu0 0
    %141 = vperm.xlu0 %140, %v137
    %v142 = vpop.permute.xlu0 %141
    %v144 = vmul.f32 %v142, %v71
    %145 = vset.pattern.permute.xlu0 1
    %146 = vperm.xlu0 %145, %v137
    %v147 = vpop.permute.xlu0 %146
    %v149 = vmul.f32 %v147, %v80
    %v150 = vadd.f32 %v144, %v149
    %152 = vset.pattern.permute.xlu0 0
    %153 = vperm.xlu0 %152, %v138
    %v154 = vpop.permute.xlu0 %153
    %v156 = vmul.f32 %v154, %v91
    %v157 = vadd.f32 %v150, %v156
    %158 = vset.pattern.permute.xlu0 1
    %159 = vperm.xlu0 %158, %v138
    %v160 = vpop.permute.xlu0 %159
    %v162 = vmul.f32 %v160, %v101
    %v163 = vadd.f32 %v157, %v162
    %v164 = vadd.f32 %v163, %v108
    %vm165 = vcmp.gt.f32.partialorder %v164, 0.0
    %v166 = vmul.f32 %v164, 0.2
    %v167 = vsel %vm165, %v164, %v166
    %v168 = vpack.c.bf16 %v167, %v167
    %v170 = vunpack.c.l.b16 %v168
    %v171 = vpack.c.b16 %v170, %v170
    %v173 = vshrl.u32 %v171, 16
    %v175 = vrot.slane %v173, 7
    %v176 = vshll.u32 %v171, 16
    %v178 = vor.u32 %v175, %v176
    %v179 = vrot.slane %v175, 4
    %s182 = scalar_lea.vmem %s3, 8
    %v183 = vld [vmem:[%s182] sm:$0xf]
    %v184 = vsel %vm129, %v178, %v183
    %185 = vst [vmem:[%s182] sm:$0xf] %v184
    %v186 = vld [vmem:[%s182 + $0x4] sm:$0x1]
    %v187 = vsel %vm41, %v179, %v186
    %188 = vst [vmem:[%s182 + $0x4] sm:$0x1] %v187
    // Predicated region
    $region22: #{conv_encoder_forward.4} parent=1 // pred_check
      _
    $region23: #{conv_encoder_forward.4} parent=1 // pred_check_branch
      %190 = sbr.rel (0) target = $region25
    $region24: #{conv_encoder_forward.4} parent=1 // pred_region
      _
    $region25: #{conv_encoder_forward.4} parent=1 // pred_fallthru
      _
    // Predicated region
    $region26: #{conv_encoder_forward.4} parent=1 // pred_check
      _
    $region27: #{conv_encoder_forward.4} parent=1 // pred_check_branch
      %192 = sbr.rel (0) target = $region29
    $region28: #{conv_encoder_forward.4} parent=1 // pred_region
      _
    $region29: #{conv_encoder_forward.4} parent=1 // pred_fallthru
      _
    %193 = vsyncpa [#allocation3], 1
    %194 = vsyncpa [#allocation5], 1

// kernel: conv_encoder_forward.6
$region0: #{conv_encoder_forward.6}
  #allocation0 [shape = 'u32[]', space=smem, size = 0x4, offset = 0x4, fixed_abs, tag = 'smem constant byte address 0x4 - core index']
  #allocation1 [shape = 'u32[144,128]{1,0:T(1,128)}', space=vmem, size = 0x12000, scoped, tag = 'internal scratch']
  %s0 = inlined_call_operand.vmem [shape: bf16[2,4,128], index: 0, kind: input, shape index: {}]
  %s1 = inlined_call_operand.vmem [shape: f32[1,128], index: 1, kind: input, shape index: {}]
  %s2 = inlined_call_operand.vmem [shape: f32[1,128], index: 2, kind: input, shape index: {}]
  %s3 = inlined_call_operand.vmem [shape: bf16[2,4,128], index: 3, kind: output, shape index: {}]
  %s4 = sld [smem:[#allocation0]]
  $region22: #{conv_encoder_forward.6} parent=0
    _
  %s6 = ssub.s32 1, %s4
  %s7 = scalar_select 0, %s6, %s4
  // Predicated region
  $region2: #{conv_encoder_forward.6} parent=0 // pred_check
    _
  $region3: #{conv_encoder_forward.6} parent=0 // pred_check_branch
    %9 = sbr.rel (0) target = $region5
  $region4: #{conv_encoder_forward.6} parent=0 // pred_region
    _
  $region5: #{conv_encoder_forward.6} parent=0 // pred_fallthru
    _
  // Predicated region
  $region6: #{conv_encoder_forward.6} parent=0 // pred_check
    _
  $region7: #{conv_encoder_forward.6} parent=0 // pred_check_branch
    %11 = sbr.rel (0) target = $region9
  $region8: #{conv_encoder_forward.6} parent=0 // pred_region
    _
  $region9: #{conv_encoder_forward.6} parent=0 // pred_fallthru
    _
  // Predicated region
  $region10: #{conv_encoder_forward.6} parent=0 // pred_check
    _
  $region11: #{conv_encoder_forward.6} parent=0 // pred_check_branch
    %13 = sbr.rel (0) target = $region13
  $region12: #{conv_encoder_forward.6} parent=0 // pred_region
    _
  $region13: #{conv_encoder_forward.6} parent=0 // pred_fallthru
    _
  %v14 = vld [vmem:[%s0] sm:$0x3]
  %v15 = vld [vmem:[%s0 + $0x2] sm:$0x3]
  %v16 = vunpack.c.l.bf16 %v14
  %v17 = vunpack.c.l.bf16 %v15
  %v18 = vld [vmem:[%s1] sm:$0x1]
  %v20 = vlaneseq
  %v21 = vshrl.u32 %v20, 7
  %v22 = vsub.s32 0, %v21
  %v23 = vrot.slane %v18, %v22
  %v25 = vmul.f32 %v16, %v23
  %v26 = vmul.f32 %v17, %v23
  %v27 = vld [vmem:[%s2] sm:$0x1]
  %v29 = vlaneseq
  %v30 = vshrl.u32 %v29, 7
  %v31 = vsub.s32 0, %v30
  %v32 = vrot.slane %v27, %v31
  %v34 = vadd.f32 %v25, %v32
  %v35 = vadd.f32 %v26, %v32
  %vm36 = vcmp.gt.f32.partialorder %v34, 0.0
  %vm37 = vcmp.gt.f32.partialorder %v35, 0.0
  %v38 = vmul.f32 %v34, 0.2
  %v39 = vmul.f32 %v35, 0.2
  %v40 = vsel %vm36, %v34, %v38
  %v41 = vsel %vm37, %v35, %v39
  %v42 = vpack.c.bf16 %v40, %v40
  %v43 = vpack.c.bf16 %v41, %v41
  %44 = vst [vmem:[%s3] sm:$0x3] %v42
  %45 = vst [vmem:[%s3 + $0x2] sm:$0x3] %v43
  // Predicated region
  $region14: #{conv_encoder_forward.6} parent=0 // pred_check
    _
  $region15: #{conv_encoder_forward.6} parent=0 // pred_check_branch
    %47 = sbr.rel (0) target = $region17
  $region16: #{conv_encoder_forward.6} parent=0 // pred_region
    _
  $region17: #{conv_encoder_forward.6} parent=0 // pred_fallthru
    _
  // Predicated region
  $region18: #{conv_encoder_forward.6} parent=0 // pred_check
    _
  $region19: #{conv_encoder_forward.6} parent=0 // pred_check_branch
    %49 = sbr.rel (0) target = $region21
  $region20: #{conv_encoder_forward.6} parent=0 // pred_region
    _
  $region21: #{conv_encoder_forward.6} parent=0 // pred_fallthru
    _

// kernel: conv_encoder_forward.7
$region0: #{conv_encoder_forward.7}
  #allocation0 [shape = 'u32[]', space=smem, size = 0x4, offset = 0x4, fixed_abs, tag = 'smem constant byte address 0x4 - core index']
  #allocation1 [shape = 'u32[144,128]{1,0:T(1,128)}', space=vmem, size = 0x12000, scoped, tag = 'internal scratch']
  %s0 = inlined_call_operand.vmem [shape: bf16[2,512], index: 0, kind: input, shape index: {}]
  %s1 = inlined_call_operand.vmem [shape: bf16[512,128], index: 1, kind: input, shape index: {}]
  %s2 = inlined_call_operand.vmem [shape: f32[1,128], index: 2, kind: input, shape index: {}]
  %s3 = inlined_call_operand.hbm [shape: f32[2,128], index: 3, kind: output, shape index: {}]
  %s4 = sld [smem:[#allocation0]]
  $region22: #{conv_encoder_forward.7} parent=0
    _
  %s6 = ssub.s32 1, %s4
  %s7 = scalar_select 0, %s6, %s4
  $region1: #{conv_encoder_forward.7} parent=0
    #allocation2 [shape = 'u8[1024]{0}', space=vmem, size = 0x400, scoped, tag = 'output window, operand 0, single buffered']
    #allocation3 [shape = 's32[1]{0}', space=sflag, size = 0x4, scoped, tag = 'scoped memory for conv_encoder_forward.7']
    %8 = vsyncpa [#allocation3], 0
    // Predicated region
    $region2: #{conv_encoder_forward.7} parent=1 // pred_check
      _
    $region3: #{conv_encoder_forward.7} parent=1 // pred_check_branch
      %10 = sbr.rel (0) target = $region5
    $region4: #{conv_encoder_forward.7} parent=1 // pred_region
      _
    $region5: #{conv_encoder_forward.7} parent=1 // pred_fallthru
      _
    // Predicated region
    $region6: #{conv_encoder_forward.7} parent=1 // pred_check
      _
    $region7: #{conv_encoder_forward.7} parent=1 // pred_check_branch
      %12 = sbr.rel (0) target = $region9
    $region8: #{conv_encoder_forward.7} parent=1 // pred_region
      _
    $region9: #{conv_encoder_forward.7} parent=1 // pred_fallthru
      _
    // Predicated region
    $region10: #{conv_encoder_forward.7} parent=1 // pred_check
      _
    $region11: #{conv_encoder_forward.7} parent=1 // pred_check_branch
      %14 = sbr.rel (0) target = $region13
    $region12: #{conv_encoder_forward.7} parent=1 // pred_region
      _
    $region13: #{conv_encoder_forward.7} parent=1 // pred_fallthru
      _
    %v16 = vld [vmem:[%s0] sm:$0xf]
    %v17 = vld [vmem:[%s1] sm:$0xf]
    %v18 = vld [vmem:[%s1 + $0x4] sm:$0xf]
    %v19 = vld [vmem:[%s1 + $0x8] sm:$0xf]
    %v20 = vld [vmem:[%s1 + $0xc] sm:$0xf]
    %v21 = vld [vmem:[%s1 + $0x10] sm:$0xf]
    %v22 = vld [vmem:[%s1 + $0x14] sm:$0xf]
    %v23 = vld [vmem:[%s1 + $0x18] sm:$0xf]
    %v24 = vld [vmem:[%s1 + $0x1c] sm:$0xf]
    %v25 = vld [vmem:[%s1 + $0x20] sm:$0xf]
    %v26 = vld [vmem:[%s1 + $0x24] sm:$0xf]
    %v27 = vld [vmem:[%s1 + $0x28] sm:$0xf]
    %v28 = vld [vmem:[%s1 + $0x2c] sm:$0xf]
    %v29 = vld [vmem:[%s1 + $0x30] sm:$0xf]
    %v30 = vld [vmem:[%s1 + $0x34] sm:$0xf]
    %v31 = vld [vmem:[%s1 + $0x38] sm:$0xf]
    %v32 = vld [vmem:[%s1 + $0x3c] sm:$0xf]
    %v33 = vld [vmem:[%s1 + $0x40] sm:$0xf]
    %v34 = vld [vmem:[%s1 + $0x44] sm:$0xf]
    %v35 = vld [vmem:[%s1 + $0x48] sm:$0xf]
    %v36 = vld [vmem:[%s1 + $0x4c] sm:$0xf]
    %v37 = vld [vmem:[%s1 + $0x50] sm:$0xf]
    %v38 = vld [vmem:[%s1 + $0x54] sm:$0xf]
    %v39 = vld [vmem:[%s1 + $0x58] sm:$0xf]
    %v40 = vld [vmem:[%s1 + $0x5c] sm:$0xf]
    %v41 = vld [vmem:[%s1 + $0x60] sm:$0xf]
    %v42 = vld [vmem:[%s1 + $0x64] sm:$0xf]
    %v43 = vld [vmem:[%s1 + $0x68] sm:$0xf]
    %v44 = vld [vmem:[%s1 + $0x6c] sm:$0xf]
    %v45 = vld [vmem:[%s1 + $0x70] sm:$0xf]
    %v46 = vld [vmem:[%s1 + $0x74] sm:$0xf]
    %v47 = vld [vmem:[%s1 + $0x78] sm:$0xf]
    %v48 = vld [vmem:[%s1 + $0x7c] sm:$0xf]
    %v49 = vld [vmem:[%s1 + $0x80] sm:$0xf]
    %v50 = vld [vmem:[%s1 + $0x84] sm:$0xf]
    %v51 = vld [vmem:[%s1 + $0x88] sm:$0xf]
    %v52 = vld [vmem:[%s1 + $0x8c] sm:$0xf]
    %v53 = vld [vmem:[%s1 + $0x90] sm:$0xf]
    %v54 = vld [vmem:[%s1 + $0x94] sm:$0xf]
    %v55 = vld [vmem:[%s1 + $0x98] sm:$0xf]
    %v56 = vld [vmem:[%s1 + $0x9c] sm:$0xf]
    %v57 = vld [vmem:[%s1 + $0xa0] sm:$0xf]
    %v58 = vld [vmem:[%s1 + $0xa4] sm:$0xf]
    %v59 = vld [vmem:[%s1 + $0xa8] sm:$0xf]
    %v60 = vld [vmem:[%s1 + $0xac] sm:$0xf]
    %v61 = vld [vmem:[%s1 + $0xb0] sm:$0xf]
    %v62 = vld [vmem:[%s1 + $0xb4] sm:$0xf]
    %v63 = vld [vmem:[%s1 + $0xb8] sm:$0xf]
    %v64 = vld [vmem:[%s1 + $0xbc] sm:$0xf]
    %v65 = vld [vmem:[%s1 + $0xc0] sm:$0xf]
    %v66 = vld [vmem:[%s1 + $0xc4] sm:$0xf]
    %v67 = vld [vmem:[%s1 + $0xc8] sm:$0xf]
    %v68 = vld [vmem:[%s1 + $0xcc] sm:$0xf]
    %v69 = vld [vmem:[%s1 + $0xd0] sm:$0xf]
    %v70 = vld [vmem:[%s1 + $0xd4] sm:$0xf]
    %v71 = vld [vmem:[%s1 + $0xd8] sm:$0xf]
    %v72 = vld [vmem:[%s1 + $0xdc] sm:$0xf]
    %v73 = vld [vmem:[%s1 + $0xe0] sm:$0xf]
    %v74 = vld [vmem:[%s1 + $0xe4] sm:$0xf]
    %v75 = vld [vmem:[%s1 + $0xe8] sm:$0xf]
    %v76 = vld [vmem:[%s1 + $0xec] sm:$0xf]
    %v77 = vld [vmem:[%s1 + $0xf0] sm:$0xf]
    %v78 = vld [vmem:[%s1 + $0xf4] sm:$0xf]
    %v79 = vld [vmem:[%s1 + $0xf8] sm:$0xf]
    %v80 = vld [vmem:[%s1 + $0xfc] sm:$0xf]
    %v81 = vld [vmem:[%s2] sm:$0x1]
    %v83 = vlaneseq
    %v84 = vshrl.u32 %v83, 7
    %v85 = vsub.s32 0, %v84
    %v86 = vrot.slane %v81, %v85
    %v90 = vunpack.c.l.s4 1966171168
    %v91 = vunpack.c.0.s8 %v90
    %v92 = vlaneseq
    %v93 = vshrl.u32 %v92, 7
    %v94 = vsub.s32 %v91, %v93
    %v95 = vrot.slane %v16, %v94
    %v96 = vcombine.high %v95, %v95
    %v98 = vunpack.c.l.s4 1966171168
    %v99 = vunpack.c.0.s8 %v98
    %v100 = vlaneseq
    %v101 = vshrl.u32 %v100, 7
    %v102 = vsub.s32 %v99, %v101
    %v103 = vrot.slane %v95, %v102
    %v105 = vunpack.c.l.s4 1966171168
    %v106 = vunpack.c.0.s8 %v105
    %v107 = vlaneseq
    %v108 = vshrl.u32 %v107, 7
    %v109 = vsub.s32 %v106, %v108
    %v110 = vrot.slane %v96, %v109
    %v111 = vcombine.high %v103, %v103
    %v112 = vcombine.high %v110, %v110
    %v181 = vunpack.c.l.b16 %v17
    %v182 = vunpack.c.l.b16 %v18
    %v183 = vunpack.c.l.b16 %v19
    %v184 = vunpack.c.l.b16 %v20
    %v185 = vunpack.c.l.b16 %v21
    %v186 = vunpack.c.l.b16 %v22
    %v187 = vunpack.c.l.b16 %v23
    %v188 = vunpack.c.l.b16 %v24
    %v189 = vunpack.c.l.b16 %v25
    %v190 = vunpack.c.l.b16 %v26
    %v191 = vunpack.c.l.b16 %v27
    %v192 = vunpack.c.l.b16 %v28
    %v193 = vunpack.c.l.b16 %v29
    %v194 = vunpack.c.l.b16 %v30
    %v195 = vunpack.c.l.b16 %v31
    %v196 = vunpack.c.l.b16 %v32
    %v197 = vunpack.c.l.b16 %v33
    %v198 = vunpack.c.l.b16 %v34
    %v199 = vunpack.c.l.b16 %v35
    %v200 = vunpack.c.l.b16 %v36
    %v201 = vunpack.c.l.b16 %v37
    %v202 = vunpack.c.l.b16 %v38
    %v203 = vunpack.c.l.b16 %v39
    %v204 = vunpack.c.l.b16 %v40
    %v205 = vunpack.c.l.b16 %v41
    %v206 = vunpack.c.l.b16 %v42
    %v207 = vunpack.c.l.b16 %v43
    %v208 = vunpack.c.l.b16 %v44
    %v209 = vunpack.c.l.b16 %v45
    %v210 = vunpack.c.l.b16 %v46
    %v211 = vunpack.c.l.b16 %v47
    %v212 = vunpack.c.l.b16 %v48
    %v213 = vunpack.c.l.b16 %v49
    %v214 = vunpack.c.l.b16 %v50
    %v215 = vunpack.c.l.b16 %v51
    %v216 = vunpack.c.l.b16 %v52
    %v217 = vunpack.c.l.b16 %v53
    %v218 = vunpack.c.l.b16 %v54
    %v219 = vunpack.c.l.b16 %v55
    %v220 = vunpack.c.l.b16 %v56
    %v221 = vunpack.c.l.b16 %v57
    %v222 = vunpack.c.l.b16 %v58
    %v223 = vunpack.c.l.b16 %v59
    %v224 = vunpack.c.l.b16 %v60
    %v225 = vunpack.c.l.b16 %v61
    %v226 = vunpack.c.l.b16 %v62
    %v227 = vunpack.c.l.b16 %v63
    %v228 = vunpack.c.l.b16 %v64
    %v229 = vunpack.c.l.b16 %v65
    %v230 = vunpack.c.l.b16 %v66
    %v231 = vunpack.c.l.b16 %v67
    %v232 = vunpack.c.l.b16 %v68
    %v233 = vunpack.c.l.b16 %v69
    %v234 = vunpack.c.l.b16 %v70
    %v235 = vunpack.c.l.b16 %v71
    %v236 = vunpack.c.l.b16 %v72
    %v237 = vunpack.c.l.b16 %v73
    %v238 = vunpack.c.l.b16 %v74
    %v239 = vunpack.c.l.b16 %v75
    %v240 = vunpack.c.l.b16 %v76
    %v241 = vunpack.c.l.b16 %v77
    %v242 = vunpack.c.l.b16 %v78
    %v243 = vunpack.c.l.b16 %v79
    %v244 = vunpack.c.l.b16 %v80
    %v245 = vpack.c.b16 %v182, %v181
    %v246 = vpack.c.b16 %v184, %v183
    %v247 = vpack.c.b16 %v186, %v185
    %v248 = vpack.c.b16 %v188, %v187
    %v249 = vpack.c.b16 %v190, %v189
    %v250 = vpack.c.b16 %v192, %v191
    %v251 = vpack.c.b16 %v194, %v193
    %v252 = vpack.c.b16 %v196, %v195
    %v253 = vpack.c.b16 %v198, %v197
    %v254 = vpack.c.b16 %v200, %v199
    %v255 = vpack.c.b16 %v202, %v201
    %v256 = vpack.c.b16 %v204, %v203
    %v257 = vpack.c.b16 %v206, %v205
    %v258 = vpack.c.b16 %v208, %v207
    %v259 = vpack.c.b16 %v210, %v209
    %v260 = vpack.c.b16 %v212, %v211
    %v261 = vpack.c.b16 %v214, %v213
    %v262 = vpack.c.b16 %v216, %v215
    %v263 = vpack.c.b16 %v218, %v217
    %v264 = vpack.c.b16 %v220, %v219
    %v265 = vpack.c.b16 %v222, %v221
    %v266 = vpack.c.b16 %v224, %v223
    %v267 = vpack.c.b16 %v226, %v225
    %v268 = vpack.c.b16 %v228, %v227
    %v269 = vpack.c.b16 %v230, %v229
    %v270 = vpack.c.b16 %v232, %v231
    %v271 = vpack.c.b16 %v234, %v233
    %v272 = vpack.c.b16 %v236, %v235
    %v273 = vpack.c.b16 %v238, %v237
    %v274 = vpack.c.b16 %v240, %v239
    %v275 = vpack.c.b16 %v242, %v241
    %v276 = vpack.c.b16 %v244, %v243
    %309 = vmatprep.subr.bf16.mxu0 0
    %310 = vmatpush1.bf16.msra.mxu0 %v245
    %311 = vmatprep.subr.bf16.mxu0 0
    %312 = vmatpush1.bf16.msra.mxu0 %v246
    %313 = vmatprep.subr.bf16.mxu0 0
    %314 = vmatpush1.bf16.msra.mxu0 %v247
    %315 = vmatprep.subr.bf16.mxu0 0
    %316 = vmatpush1.bf16.msra.mxu0 %v248
    %317 = vmatprep.subr.bf16.mxu0 0
    %318 = vmatpush1.bf16.msra.mxu0 %v249
    %319 = vmatprep.subr.bf16.mxu0 0
    %320 = vmatpush1.bf16.msra.mxu0 %v250
    %321 = vmatprep.subr.bf16.mxu0 0
    %322 = vmatpush1.bf16.msra.mxu0 %v251
    %323 = vmatprep.subr.bf16.mxu0 0
    %324 = vmatpush1.bf16.msra.mxu0 %v252
    %325 = vmatprep.subr.bf16.mxu0 0
    %326 = vmatpush1.bf16.msra.mxu0 %v253
    %327 = vmatprep.subr.bf16.mxu0 0
    %328 = vmatpush1.bf16.msra.mxu0 %v254
    %329 = vmatprep.subr.bf16.mxu0 0
    %330 = vmatpush1.bf16.msra.mxu0 %v255
    %331 = vmatprep.subr.bf16.mxu0 0
    %332 = vmatpush1.bf16.msra.mxu0 %v256
    %333 = vmatprep.subr.bf16.mxu0 0
    %334 = vmatpush1.bf16.msra.mxu0 %v257
    %335 = vmatprep.subr.bf16.mxu0 0
    %336 = vmatpush1.bf16.msra.mxu0 %v258
    %337 = vmatprep.subr.bf16.mxu0 0
    %338 = vmatpush1.bf16.msra.mxu0 %v259
    %339 = vmatprep.subr.bf16.mxu0 0
    %340 = vmatpush1.bf16.msra.mxu0 %v260
    %341 = vmatprep.mubr.bf16.mxu0 %v110
    %342 = vmatmul.mubr.bf16.gmra.mrb[0].mxu0 %v103
    %v343 = vpop.f32.mrb[0].mxu0
    %v344 = vadd.f32 %v86, %v343
    %v345 = vpop.f32.mrb[0].mxu0
    %v346 = vpop.f32.mrb[0].mxu0
    %v347 = vpop.f32.mrb[0].mxu0
    %348 = vdwg.mxu0
    %349 = vmatprep.subr.bf16.mxu0 0
    %350 = vmatpush1.bf16.msra.mxu0 %v261
    %351 = vmatprep.subr.bf16.mxu0 0
    %352 = vmatpush1.bf16.msra.mxu0 %v262
    %353 = vmatprep.subr.bf16.mxu0 0
    %354 = vmatpush1.bf16.msra.mxu0 %v263
    %355 = vmatprep.subr.bf16.mxu0 0
    %356 = vmatpush1.bf16.msra.mxu0 %v264
    %357 = vmatprep.subr.bf16.mxu0 0
    %358 = vmatpush1.bf16.msra.mxu0 %v265
    %359 = vmatprep.subr.bf16.mxu0 0
    %360 = vmatpush1.bf16.msra.mxu0 %v266
    %361 = vmatprep.subr.bf16.mxu0 0
    %362 = vmatpush1.bf16.msra.mxu0 %v267
    %363 = vmatprep.subr.bf16.mxu0 0
    %364 = vmatpush1.bf16.msra.mxu0 %v268
    %365 = vmatprep.subr.bf16.mxu0 0
    %366 = vmatpush1.bf16.msra.mxu0 %v269
    %367 = vmatprep.subr.bf16.mxu0 0
    %368 = vmatpush1.bf16.msra.mxu0 %v270
    %369 = vmatprep.subr.bf16.mxu0 0
    %370 = vmatpush1.bf16.msra.mxu0 %v271
    %371 = vmatprep.subr.bf16.mxu0 0
    %372 = vmatpush1.bf16.msra.mxu0 %v272
    %373 = vmatprep.subr.bf16.mxu0 0
    %374 = vmatpush1.bf16.msra.mxu0 %v273
    %375 = vmatprep.subr.bf16.mxu0 0
    %376 = vmatpush1.bf16.msra.mxu0 %v274
    %377 = vmatprep.subr.bf16.mxu0 0
    %378 = vmatpush1.bf16.msra.mxu0 %v275
    %379 = vmatprep.subr.bf16.mxu0 0
    %380 = vmatpush1.bf16.msra.mxu0 %v276
    %381 = vmatprep.mubr.bf16.mxu0 %v112
    %382 = vmatmul.mubr.bf16.gmra.mrb[0].mxu0 %v111
    %v383 = vpop.f32.mrb[0].mxu0
    %v384 = vadd.f32 %v344, %v383
    %v385 = vpop.f32.mrb[0].mxu0
    %v386 = vpop.f32.mrb[0].mxu0
    %v387 = vpop.f32.mrb[0].mxu0
    %388 = vdwg.mxu0
    %389 = vst [vmem:[#allocation2] sm:$0x3] %v384
    // Predicated region
    $region14: #{conv_encoder_forward.7} parent=1 // pred_check
      _
    $region15: #{conv_encoder_forward.7} parent=1 // pred_check_branch
      %391 = sbr.rel (0) target = $region17
    $region16: #{conv_encoder_forward.7} parent=1 // pred_region
      %s393 = ssub.s32 32, 32
      %394 = vsyncadd [#allocation3], %s393
      %s396 = sshll.u32 [#allocation2], 4
      %s397 = int_to_ptr.vmem [resolvable:$true] %s396
      %399 = dma.vmem_to_hbm [thread:$0]  %s397, 32, %s3, [#allocation3]
    $region17: #{conv_encoder_forward.7} parent=1 // pred_fallthru
      _
    // Predicated region
    $region18: #{conv_encoder_forward.7} parent=1 // pred_check
      _
    $region19: #{conv_encoder_forward.7} parent=1 // pred_check_branch
      %401 = sbr.rel (0) target = $region21
    $region20: #{conv_encoder_forward.7} parent=1 // pred_region
      %402 = dma.done [#allocation3], 32
    $region21: #{conv_encoder_forward.7} parent=1 // pred_fallthru
      _
    %403 = vsyncpa [#allocation3], 1

// kernel: conv_encoder_forward.5
$region0: #{conv_encoder_forward.5}
  #allocation0 [shape = 'u32[]', space=smem, size = 0x4, offset = 0x4, fixed_abs, tag = 'smem constant byte address 0x4 - core index']
  #allocation1 [shape = 'u32[144,128]{1,0:T(1,128)}', space=vmem, size = 0x12000, scoped, tag = 'internal scratch']
  %s0 = inlined_call_operand.vmem [shape: bf16[2,5,256], index: 0, kind: input, shape index: {}]
  %s1 = inlined_call_operand.hbm [shape: bf16[256,128], index: 1, kind: input, shape index: {}]
  %s2 = inlined_call_operand.hbm [shape: bf16[256,128], index: 2, kind: input, shape index: {}]
  %s3 = inlined_call_operand.vmem [shape: bf16[2,4,128], index: 3, kind: output, shape index: {0}]
  %s4 = inlined_call_operand.vmem [shape: f32[1,2,128], index: 4, kind: output, shape index: {1}]
  %5 = xla_tuple %s3, %s4
  %s6 = sld [smem:[#allocation0]]
  $region38: #{conv_encoder_forward.5} parent=0
    _
  %s8 = ssub.s32 1, %s6
  %s9 = scalar_select 0, %s8, %s6
  $region1: #{conv_encoder_forward.5} parent=0
    #allocation2 [shape = 'u8[65536]{0}', space=vmem, size = 0x10000, scoped, tag = 'input window, operand 1, single buffered']
    #allocation3 [shape = 's32[1]{0}', space=sflag, size = 0x4, scoped, tag = 'scoped memory for conv_encoder_forward.5']
    #allocation4 [shape = 'u8[65536]{0}', space=vmem, size = 0x10000, scoped, tag = 'input window, operand 2, single buffered']
    #allocation5 [shape = 's32[1]{0}', space=sflag, size = 0x4, scoped, tag = 'scoped memory for conv_encoder_forward.5']
    %10 = vsyncpa [#allocation3], 0
    %11 = vsyncpa [#allocation5], 0
    // Predicated region
    $region2: #{conv_encoder_forward.5} parent=1 // pred_check
      _
    $region3: #{conv_encoder_forward.5} parent=1 // pred_check_branch
      %13 = sbr.rel (0) target = $region5
    $region4: #{conv_encoder_forward.5} parent=1 // pred_region
      _
    $region5: #{conv_encoder_forward.5} parent=1 // pred_fallthru
      _
    // Predicated region
    $region6: #{conv_encoder_forward.5} parent=1 // pred_check
      _
    $region7: #{conv_encoder_forward.5} parent=1 // pred_check_branch
      %15 = sbr.rel (0) target = $region9
    $region8: #{conv_encoder_forward.5} parent=1 // pred_region
      %s17 = ssub.s32 2048, 2048
      %18 = vsyncadd [#allocation3], %s17
      %s19 = sshll.u32 [#allocation2], 4
      %s20 = int_to_ptr.vmem [resolvable:$true] %s19
      %25 = dma.hbm_to_vmem [thread:$0]  %s1, 2048, %s20, [#allocation3], 64, 64, 4
    $region9: #{conv_encoder_forward.5} parent=1 // pred_fallthru
      _
    // Predicated region
    $region10: #{conv_encoder_forward.5} parent=1 // pred_check
      _
    $region11: #{conv_encoder_forward.5} parent=1 // pred_check_branch
      %27 = sbr.rel (0) target = $region13
    $region12: #{conv_encoder_forward.5} parent=1 // pred_region
      %s29 = ssub.s32 2048, 2048
      %30 = vsyncadd [#allocation5], %s29
      %s31 = sshll.u32 [#allocation4], 4
      %s32 = int_to_ptr.vmem [resolvable:$true] %s31
      %37 = dma.hbm_to_vmem [thread:$0]  %s2, 2048, %s32, [#allocation5], 64, 64, 4
    $region13: #{conv_encoder_forward.5} parent=1 // pred_fallthru
      _
    // Predicated region
    $region14: #{conv_encoder_forward.5} parent=1 // pred_check
      _
    $region15: #{conv_encoder_forward.5} parent=1 // pred_check_branch
      %39 = sbr.rel (0) target = $region17
    $region16: #{conv_encoder_forward.5} parent=1 // pred_region
      %40 = dma.done [#allocation3], 2048
    $region17: #{conv_encoder_forward.5} parent=1 // pred_fallthru
      _
    // Predicated region
    $region18: #{conv_encoder_forward.5} parent=1 // pred_check
      _
    $region19: #{conv_encoder_forward.5} parent=1 // pred_check_branch
      %42 = sbr.rel (0) target = $region21
    $region20: #{conv_encoder_forward.5} parent=1 // pred_region
      %43 = dma.done [#allocation5], 2048
    $region21: #{conv_encoder_forward.5} parent=1 // pred_fallthru
      _
    %v45 = vld [vmem:[#allocation2] sm:$0xf]
    %v46 = vld [vmem:[#allocation2 + $0x4] sm:$0xf]
    %v47 = vld [vmem:[#allocation2 + $0x8] sm:$0xf]
    %v48 = vld [vmem:[#allocation2 + $0xc] sm:$0xf]
    %v49 = vld [vmem:[#allocation2 + $0x10] sm:$0xf]
    %v50 = vld [vmem:[#allocation2 + $0x14] sm:$0xf]
    %v51 = vld [vmem:[#allocation2 + $0x18] sm:$0xf]
    %v52 = vld [vmem:[#allocation2 + $0x1c] sm:$0xf]
    %v53 = vld [vmem:[#allocation2 + $0x20] sm:$0xf]
    %v54 = vld [vmem:[#allocation2 + $0x24] sm:$0xf]
    %v55 = vld [vmem:[#allocation2 + $0x28] sm:$0xf]
    %v56 = vld [vmem:[#allocation2 + $0x2c] sm:$0xf]
    %v57 = vld [vmem:[#allocation2 + $0x30] sm:$0xf]
    %v58 = vld [vmem:[#allocation2 + $0x34] sm:$0xf]
    %v59 = vld [vmem:[#allocation2 + $0x38] sm:$0xf]
    %v60 = vld [vmem:[#allocation2 + $0x3c] sm:$0xf]
    %v61 = vld [vmem:[#allocation2 + $0x40] sm:$0xf]
    %v62 = vld [vmem:[#allocation2 + $0x44] sm:$0xf]
    %v63 = vld [vmem:[#allocation2 + $0x48] sm:$0xf]
    %v64 = vld [vmem:[#allocation2 + $0x4c] sm:$0xf]
    %v65 = vld [vmem:[#allocation2 + $0x50] sm:$0xf]
    %v66 = vld [vmem:[#allocation2 + $0x54] sm:$0xf]
    %v67 = vld [vmem:[#allocation2 + $0x58] sm:$0xf]
    %v68 = vld [vmem:[#allocation2 + $0x5c] sm:$0xf]
    %v69 = vld [vmem:[#allocation2 + $0x60] sm:$0xf]
    %v70 = vld [vmem:[#allocation2 + $0x64] sm:$0xf]
    %v71 = vld [vmem:[#allocation2 + $0x68] sm:$0xf]
    %v72 = vld [vmem:[#allocation2 + $0x6c] sm:$0xf]
    %v73 = vld [vmem:[#allocation2 + $0x70] sm:$0xf]
    %v74 = vld [vmem:[#allocation2 + $0x74] sm:$0xf]
    %v75 = vld [vmem:[#allocation2 + $0x78] sm:$0xf]
    %v76 = vld [vmem:[#allocation2 + $0x7c] sm:$0xf]
    %v77 = vld [vmem:[#allocation4] sm:$0xf]
    %v78 = vld [vmem:[#allocation4 + $0x4] sm:$0xf]
    %v79 = vld [vmem:[#allocation4 + $0x8] sm:$0xf]
    %v80 = vld [vmem:[#allocation4 + $0xc] sm:$0xf]
    %v81 = vld [vmem:[#allocation4 + $0x10] sm:$0xf]
    %v82 = vld [vmem:[#allocation4 + $0x14] sm:$0xf]
    %v83 = vld [vmem:[#allocation4 + $0x18] sm:$0xf]
    %v84 = vld [vmem:[#allocation4 + $0x1c] sm:$0xf]
    %v85 = vld [vmem:[#allocation4 + $0x20] sm:$0xf]
    %v86 = vld [vmem:[#allocation4 + $0x24] sm:$0xf]
    %v87 = vld [vmem:[#allocation4 + $0x28] sm:$0xf]
    %v88 = vld [vmem:[#allocation4 + $0x2c] sm:$0xf]
    %v89 = vld [vmem:[#allocation4 + $0x30] sm:$0xf]
    %v90 = vld [vmem:[#allocation4 + $0x34] sm:$0xf]
    %v91 = vld [vmem:[#allocation4 + $0x38] sm:$0xf]
    %v92 = vld [vmem:[#allocation4 + $0x3c] sm:$0xf]
    %v93 = vld [vmem:[#allocation4 + $0x40] sm:$0xf]
    %v94 = vld [vmem:[#allocation4 + $0x44] sm:$0xf]
    %v95 = vld [vmem:[#allocation4 + $0x48] sm:$0xf]
    %v96 = vld [vmem:[#allocation4 + $0x4c] sm:$0xf]
    %v97 = vld [vmem:[#allocation4 + $0x50] sm:$0xf]
    %v98 = vld [vmem:[#allocation4 + $0x54] sm:$0xf]
    %v99 = vld [vmem:[#allocation4 + $0x58] sm:$0xf]
    %v100 = vld [vmem:[#allocation4 + $0x5c] sm:$0xf]
    %v101 = vld [vmem:[#allocation4 + $0x60] sm:$0xf]
    %v102 = vld [vmem:[#allocation4 + $0x64] sm:$0xf]
    %v103 = vld [vmem:[#allocation4 + $0x68] sm:$0xf]
    %v104 = vld [vmem:[#allocation4 + $0x6c] sm:$0xf]
    %v105 = vld [vmem:[#allocation4 + $0x70] sm:$0xf]
    %v106 = vld [vmem:[#allocation4 + $0x74] sm:$0xf]
    %v107 = vld [vmem:[#allocation4 + $0x78] sm:$0xf]
    %v108 = vld [vmem:[#allocation4 + $0x7c] sm:$0xf]
    %v109 = vld [vmem:[%s0] sm:$0x33]
    %v110 = vld [vmem:[%s0] sm:$0x77]
    %v112 = vunpack.c.l.b16 %v110
    %v113 = vunpack.c.h.b16 %v110
    %v114 = vpack.c.b16 %v112, %v112
    %v115 = vpack.c.b16 %v113, %v113
    %v117 = vshrl.u32 %v114, 16
    %v119 = vshll.u32 %v114, 16
    %v121 = vrot.slane %v119, 1
    %v122 = vor.u32 %v117, %v121
    %v124 = vshrl.u32 %v115, 16
    %v126 = vshll.u32 %v115, 16
    %v128 = vrot.slane %v126, 1
    %v129 = vor.u32 %v124, %v128
    %v164 = vunpack.c.l.b16 %v77
    %v165 = vunpack.c.l.b16 %v78
    %v166 = vunpack.c.l.b16 %v79
    %v167 = vunpack.c.l.b16 %v80
    %v168 = vunpack.c.l.b16 %v81
    %v169 = vunpack.c.l.b16 %v82
    %v170 = vunpack.c.l.b16 %v83
    %v171 = vunpack.c.l.b16 %v84
    %v172 = vunpack.c.l.b16 %v85
    %v173 = vunpack.c.l.b16 %v86
    %v174 = vunpack.c.l.b16 %v87
    %v175 = vunpack.c.l.b16 %v88
    %v176 = vunpack.c.l.b16 %v89
    %v177 = vunpack.c.l.b16 %v90
    %v178 = vunpack.c.l.b16 %v91
    %v179 = vunpack.c.l.b16 %v92
    %v180 = vunpack.c.l.b16 %v93
    %v181 = vunpack.c.l.b16 %v94
    %v182 = vunpack.c.l.b16 %v95
    %v183 = vunpack.c.l.b16 %v96
    %v184 = vunpack.c.l.b16 %v97
    %v185 = vunpack.c.l.b16 %v98
    %v186 = vunpack.c.l.b16 %v99
    %v187 = vunpack.c.l.b16 %v100
    %v188 = vunpack.c.l.b16 %v101
    %v189 = vunpack.c.l.b16 %v102
    %v190 = vunpack.c.l.b16 %v103
    %v191 = vunpack.c.l.b16 %v104
    %v192 = vunpack.c.l.b16 %v105
    %v193 = vunpack.c.l.b16 %v106
    %v194 = vunpack.c.l.b16 %v107
    %v195 = vunpack.c.l.b16 %v108
    %v196 = vpack.c.b16 %v165, %v164
    %v197 = vpack.c.b16 %v167, %v166
    %v198 = vpack.c.b16 %v169, %v168
    %v199 = vpack.c.b16 %v171, %v170
    %v200 = vpack.c.b16 %v173, %v172
    %v201 = vpack.c.b16 %v175, %v174
    %v202 = vpack.c.b16 %v177, %v176
    %v203 = vpack.c.b16 %v179, %v178
    %v204 = vpack.c.b16 %v181, %v180
    %v205 = vpack.c.b16 %v183, %v182
    %v206 = vpack.c.b16 %v185, %v184
    %v207 = vpack.c.b16 %v187, %v186
    %v208 = vpack.c.b16 %v189, %v188
    %v209 = vpack.c.b16 %v191, %v190
    %v210 = vpack.c.b16 %v193, %v192
    %v211 = vpack.c.b16 %v195, %v194
    %228 = vmatprep.subr.bf16.mxu0 0
    %229 = vmatpush1.bf16.msra.mxu0 %v196
    %230 = vmatprep.subr.bf16.mxu0 0
    %231 = vmatpush1.bf16.msra.mxu0 %v197
    %232 = vmatprep.subr.bf16.mxu0 0
    %233 = vmatpush1.bf16.msra.mxu0 %v198
    %234 = vmatprep.subr.bf16.mxu0 0
    %235 = vmatpush1.bf16.msra.mxu0 %v199
    %236 = vmatprep.subr.bf16.mxu0 0
    %237 = vmatpush1.bf16.msra.mxu0 %v200
    %238 = vmatprep.subr.bf16.mxu0 0
    %239 = vmatpush1.bf16.msra.mxu0 %v201
    %240 = vmatprep.subr.bf16.mxu0 0
    %241 = vmatpush1.bf16.msra.mxu0 %v202
    %242 = vmatprep.subr.bf16.mxu0 0
    %243 = vmatpush1.bf16.msra.mxu0 %v203
    %244 = vmatprep.subr.bf16.mxu0 0
    %245 = vmatpush1.bf16.msra.mxu0 %v204
    %246 = vmatprep.subr.bf16.mxu0 0
    %247 = vmatpush1.bf16.msra.mxu0 %v205
    %248 = vmatprep.subr.bf16.mxu0 0
    %249 = vmatpush1.bf16.msra.mxu0 %v206
    %250 = vmatprep.subr.bf16.mxu0 0
    %251 = vmatpush1.bf16.msra.mxu0 %v207
    %252 = vmatprep.subr.bf16.mxu0 0
    %253 = vmatpush1.bf16.msra.mxu0 %v208
    %254 = vmatprep.subr.bf16.mxu0 0
    %255 = vmatpush1.bf16.msra.mxu0 %v209
    %256 = vmatprep.subr.bf16.mxu0 0
    %257 = vmatpush1.bf16.msra.mxu0 %v210
    %258 = vmatprep.subr.bf16.mxu0 0
    %259 = vmatpush1.bf16.msra.mxu0 %v211
    %260 = vmatprep.mubr.bf16.mxu0 %v129
    %261 = vmatmul.mubr.bf16.gmra.mrb[0].mxu0 %v122
    %v262 = vpop.f32.mrb[0].mxu0
    %v263 = vadd.f32 0.0, %v262
    %v264 = vpop.f32.mrb[0].mxu0
    %v265 = vpop.f32.mrb[0].mxu0
    %v266 = vpop.f32.mrb[0].mxu0
    %267 = vdwg.mxu0
    %v269 = vunpack.c.l.b16 %v109
    %v270 = vunpack.c.h.b16 %v109
    %v271 = vpack.c.b16 %v269, %v269
    %v272 = vpack.c.b16 %v270, %v270
    %v307 = vunpack.c.l.b16 %v45
    %v308 = vunpack.c.l.b16 %v46
    %v309 = vunpack.c.l.b16 %v47
    %v310 = vunpack.c.l.b16 %v48
    %v311 = vunpack.c.l.b16 %v49
    %v312 = vunpack.c.l.b16 %v50
    %v313 = vunpack.c.l.b16 %v51
    %v314 = vunpack.c.l.b16 %v52
    %v315 = vunpack.c.l.b16 %v53
    %v316 = vunpack.c.l.b16 %v54
    %v317 = vunpack.c.l.b16 %v55
    %v318 = vunpack.c.l.b16 %v56
    %v319 = vunpack.c.l.b16 %v57
    %v320 = vunpack.c.l.b16 %v58
    %v321 = vunpack.c.l.b16 %v59
    %v322 = vunpack.c.l.b16 %v60
    %v323 = vunpack.c.l.b16 %v61
    %v324 = vunpack.c.l.b16 %v62
    %v325 = vunpack.c.l.b16 %v63
    %v326 = vunpack.c.l.b16 %v64
    %v327 = vunpack.c.l.b16 %v65
    %v328 = vunpack.c.l.b16 %v66
    %v329 = vunpack.c.l.b16 %v67
    %v330 = vunpack.c.l.b16 %v68
    %v331 = vunpack.c.l.b16 %v69
    %v332 = vunpack.c.l.b16 %v70
    %v333 = vunpack.c.l.b16 %v71
    %v334 = vunpack.c.l.b16 %v72
    %v335 = vunpack.c.l.b16 %v73
    %v336 = vunpack.c.l.b16 %v74
    %v337 = vunpack.c.l.b16 %v75
    %v338 = vunpack.c.l.b16 %v76
    %v339 = vpack.c.b16 %v308, %v307
    %v340 = vpack.c.b16 %v310, %v309
    %v341 = vpack.c.b16 %v312, %v311
    %v342 = vpack.c.b16 %v314, %v313
    %v343 = vpack.c.b16 %v316, %v315
    %v344 = vpack.c.b16 %v318, %v317
    %v345 = vpack.c.b16 %v320, %v319
    %v346 = vpack.c.b16 %v322, %v321
    %v347 = vpack.c.b16 %v324, %v323
    %v348 = vpack.c.b16 %v326, %v325
    %v349 = vpack.c.b16 %v328, %v327
    %v350 = vpack.c.b16 %v330, %v329
    %v351 = vpack.c.b16 %v332, %v331
    %v352 = vpack.c.b16 %v334, %v333
    %v353 = vpack.c.b16 %v336, %v335
    %v354 = vpack.c.b16 %v338, %v337
    %371 = vmatprep.subr.bf16.mxu0 0
    %372 = vmatpush1.bf16.msra.mxu0 %v339
    %373 = vmatprep.subr.bf16.mxu0 0
    %374 = vmatpush1.bf16.msra.mxu0 %v340
    %375 = vmatprep.subr.bf16.mxu0 0
    %376 = vmatpush1.bf16.msra.mxu0 %v341
    %377 = vmatprep.subr.bf16.mxu0 0
    %378 = vmatpush1.bf16.msra.mxu0 %v342
    %379 = vmatprep.subr.bf16.mxu0 0
    %380 = vmatpush1.bf16.msra.mxu0 %v343
    %381 = vmatprep.subr.bf16.mxu0 0
    %382 = vmatpush1.bf16.msra.mxu0 %v344
    %383 = vmatprep.subr.bf16.mxu0 0
    %384 = vmatpush1.bf16.msra.mxu0 %v345
    %385 = vmatprep.subr.bf16.mxu0 0
    %386 = vmatpush1.bf16.msra.mxu0 %v346
    %387 = vmatprep.subr.bf16.mxu0 0
    %388 = vmatpush1.bf16.msra.mxu0 %v347
    %389 = vmatprep.subr.bf16.mxu0 0
    %390 = vmatpush1.bf16.msra.mxu0 %v348
    %391 = vmatprep.subr.bf16.mxu0 0
    %392 = vmatpush1.bf16.msra.mxu0 %v349
    %393 = vmatprep.subr.bf16.mxu0 0
    %394 = vmatpush1.bf16.msra.mxu0 %v350
    %395 = vmatprep.subr.bf16.mxu0 0
    %396 = vmatpush1.bf16.msra.mxu0 %v351
    %397 = vmatprep.subr.bf16.mxu0 0
    %398 = vmatpush1.bf16.msra.mxu0 %v352
    %399 = vmatprep.subr.bf16.mxu0 0
    %400 = vmatpush1.bf16.msra.mxu0 %v353
    %401 = vmatprep.subr.bf16.mxu0 0
    %402 = vmatpush1.bf16.msra.mxu0 %v354
    %403 = vmatprep.mubr.bf16.mxu0 %v272
    %404 = vmatmul.mubr.bf16.gmra.mrb[0].mxu0 %v271
    %v405 = vpop.f32.mrb[0].mxu0
    %v406 = vadd.f32 %v263, %v405
    %v407 = vpop.f32.mrb[0].mxu0
    %v408 = vpop.f32.mrb[0].mxu0
    %v409 = vpop.f32.mrb[0].mxu0
    %410 = vdwg.mxu0
    %vm411 = vcmask 1043456
    %v412 = vsel %vm411, %v406, 0.0
    %v413 = vrot.slane %v412, 4
    %v414 = vadd.f32 %v412, %v413
    %v415 = vrot.slane %v414, 2
    %v416 = vadd.f32 %v414, %v415
    %v417 = vrot.slane %v416, 1
    %v418 = vadd.f32 %v416, %v417
    %v419 = vadd.f32 %v418, 0.0
    %v420 = vmul.f32 %v406, %v406
    %v421 = vsel %vm411, %v420, 0.0
    %v422 = vrot.slane %v421, 4
    %v423 = vadd.f32 %v421, %v422
    %v424 = vrot.slane %v423, 2
    %v425 = vadd.f32 %v423, %v424
    %v426 = vrot.slane %v425, 1
    %v427 = vadd.f32 %v425, %v426
    %v428 = vadd.f32 %v427, 0.0
    %v429 = vpack.c.bf16 %v406, %v406
    %430 = vst [vmem:[%s3] sm:$0x3] %v429
    %s431 = scalar_lea.vmem %s0, 8
    %v432 = vld [vmem:[%s431] sm:$0x33]
    %v433 = vld [vmem:[%s431] sm:$0x77]
    %v435 = vunpack.c.l.b16 %v433
    %v436 = vunpack.c.h.b16 %v433
    %v437 = vpack.c.b16 %v435, %v435
    %v438 = vpack.c.b16 %v436, %v436
    %v440 = vshrl.u32 %v437, 16
    %v442 = vshll.u32 %v437, 16
    %v444 = vrot.slane %v442, 1
    %v445 = vor.u32 %v440, %v444
    %v447 = vshrl.u32 %v438, 16
    %v449 = vshll.u32 %v438, 16
    %v451 = vrot.slane %v449, 1
    %v452 = vor.u32 %v447, %v451
    %455 = vmatprep.subr.bf16.mxu0 0
    %456 = vmatpush1.bf16.msra.mxu0 %v196
    %457 = vmatprep.subr.bf16.mxu0 0
    %458 = vmatpush1.bf16.msra.mxu0 %v197
    %459 = vmatprep.subr.bf16.mxu0 0
    %460 = vmatpush1.bf16.msra.mxu0 %v198
    %461 = vmatprep.subr.bf16.mxu0 0
    %462 = vmatpush1.bf16.msra.mxu0 %v199
    %463 = vmatprep.subr.bf16.mxu0 0
    %464 = vmatpush1.bf16.msra.mxu0 %v200
    %465 = vmatprep.subr.bf16.mxu0 0
    %466 = vmatpush1.bf16.msra.mxu0 %v201
    %467 = vmatprep.subr.bf16.mxu0 0
    %468 = vmatpush1.bf16.msra.mxu0 %v202
    %469 = vmatprep.subr.bf16.mxu0 0
    %470 = vmatpush1.bf16.msra.mxu0 %v203
    %471 = vmatprep.subr.bf16.mxu0 0
    %472 = vmatpush1.bf16.msra.mxu0 %v204
    %473 = vmatprep.subr.bf16.mxu0 0
    %474 = vmatpush1.bf16.msra.mxu0 %v205
    %475 = vmatprep.subr.bf16.mxu0 0
    %476 = vmatpush1.bf16.msra.mxu0 %v206
    %477 = vmatprep.subr.bf16.mxu0 0
    %478 = vmatpush1.bf16.msra.mxu0 %v207
    %479 = vmatprep.subr.bf16.mxu0 0
    %480 = vmatpush1.bf16.msra.mxu0 %v208
    %481 = vmatprep.subr.bf16.mxu0 0
    %482 = vmatpush1.bf16.msra.mxu0 %v209
    %483 = vmatprep.subr.bf16.mxu0 0
    %484 = vmatpush1.bf16.msra.mxu0 %v210
    %485 = vmatprep.subr.bf16.mxu0 0
    %486 = vmatpush1.bf16.msra.mxu0 %v211
    %487 = vmatprep.mubr.bf16.mxu0 %v452
    %488 = vmatmul.mubr.bf16.gmra.mrb[0].mxu0 %v445
    %v489 = vpop.f32.mrb[0].mxu0
    %v490 = vadd.f32 0.0, %v489
    %v491 = vpop.f32.mrb[0].mxu0
    %v492 = vpop.f32.mrb[0].mxu0
    %v493 = vpop.f32.mrb[0].mxu0
    %494 = vdwg.mxu0
    %v496 = vunpack.c.l.b16 %v432
    %v497 = vunpack.c.h.b16 %v432
    %v498 = vpack.c.b16 %v496, %v496
    %v499 = vpack.c.b16 %v497, %v497
    %502 = vmatprep.subr.bf16.mxu0 0
    %503 = vmatpush1.bf16.msra.mxu0 %v339
    %504 = vmatprep.subr.bf16.mxu0 0
    %505 = vmatpush1.bf16.msra.mxu0 %v340
    %506 = vmatprep.subr.bf16.mxu0 0
    %507 = vmatpush1.bf16.msra.mxu0 %v341
    %508 = vmatprep.subr.bf16.mxu0 0
    %509 = vmatpush1.bf16.msra.mxu0 %v342
    %510 = vmatprep.subr.bf16.mxu0 0
    %511 = vmatpush1.bf16.msra.mxu0 %v343
    %512 = vmatprep.subr.bf16.mxu0 0
    %513 = vmatpush1.bf16.msra.mxu0 %v344
    %514 = vmatprep.subr.bf16.mxu0 0
    %515 = vmatpush1.bf16.msra.mxu0 %v345
    %516 = vmatprep.subr.bf16.mxu0 0
    %517 = vmatpush1.bf16.msra.mxu0 %v346
    %518 = vmatprep.subr.bf16.mxu0 0
    %519 = vmatpush1.bf16.msra.mxu0 %v347
    %520 = vmatprep.subr.bf16.mxu0 0
    %521 = vmatpush1.bf16.msra.mxu0 %v348
    %522 = vmatprep.subr.bf16.mxu0 0
    %523 = vmatpush1.bf16.msra.mxu0 %v349
    %524 = vmatprep.subr.bf16.mxu0 0
    %525 = vmatpush1.bf16.msra.mxu0 %v350
    %526 = vmatprep.subr.bf16.mxu0 0
    %527 = vmatpush1.bf16.msra.mxu0 %v351
    %528 = vmatprep.subr.bf16.mxu0 0
    %529 = vmatpush1.bf16.msra.mxu0 %v352
    %530 = vmatprep.subr.bf16.mxu0 0
    %531 = vmatpush1.bf16.msra.mxu0 %v353
    %532 = vmatprep.subr.bf16.mxu0 0
    %533 = vmatpush1.bf16.msra.mxu0 %v354
    %534 = vmatprep.mubr.bf16.mxu0 %v499
    %535 = vmatmul.mubr.bf16.gmra.mrb[0].mxu0 %v498
    %v536 = vpop.f32.mrb[0].mxu0
    %v537 = vadd.f32 %v490, %v536
    %v538 = vpop.f32.mrb[0].mxu0
    %v539 = vpop.f32.mrb[0].mxu0
    %v540 = vpop.f32.mrb[0].mxu0
    %541 = vdwg.mxu0
    %v542 = vsel %vm411, %v537, 0.0
    %v543 = vrot.slane %v542, 4
    %v544 = vadd.f32 %v542, %v543
    %v545 = vrot.slane %v544, 2
    %v546 = vadd.f32 %v544, %v545
    %v547 = vrot.slane %v546, 1
    %v548 = vadd.f32 %v546, %v547
    %v549 = vadd.f32 %v419, %v548
    %v550 = vmul.f32 %v537, %v537
    %v551 = vsel %vm411, %v550, 0.0
    %v552 = vrot.slane %v551, 4
    %v553 = vadd.f32 %v551, %v552
    %v554 = vrot.slane %v553, 2
    %v555 = vadd.f32 %v553, %v554
    %v556 = vrot.slane %v555, 1
    %v557 = vadd.f32 %v555, %v556
    %v558 = vadd.f32 %v428, %v557
    %v559 = vpack.c.bf16 %v537, %v537
    %s560 = scalar_lea.vmem %s3, 2
    %561 = vst [vmem:[%s560] sm:$0x3] %v559
    %vm562 = vcmask 1040384
    %v563 = vsel %vm562, %v549, %v558
    %564 = vst [vmem:[%s4] sm:$0x3] %v563
    // Predicated region
    $region22: #{conv_encoder_forward.5} parent=1 // pred_check
      _
    $region23: #{conv_encoder_forward.5} parent=1 // pred_check_branch
      %566 = sbr.rel (0) target = $region25
    $region24: #{conv_encoder_forward.5} parent=1 // pred_region
      _
    $region25: #{conv_encoder_forward.5} parent=1 // pred_fallthru
      _
    // Predicated region
    $region26: #{conv_encoder_forward.5} parent=1 // pred_check
      _
    $region27: #{conv_encoder_forward.5} parent=1 // pred_check_branch
      %568 = sbr.rel (0) target = $region29
    $region28: #{conv_encoder_forward.5} parent=1 // pred_region
      _
    $region29: #{conv_encoder_forward.5} parent=1 // pred_fallthru
      _
    // Predicated region
    $region30: #{conv_encoder_forward.5} parent=1 // pred_check
      _
    $region31: #{conv_encoder_forward.5} parent=1 // pred_check_branch
      %570 = sbr.rel (0) target = $region33
    $region32: #{conv_encoder_forward.5} parent=1 // pred_region
      _
    $region33: #{conv_encoder_forward.5} parent=1 // pred_fallthru
      _
    // Predicated region
    $region34: #{conv_encoder_forward.5} parent=1 // pred_check
      _
    $region35: #{conv_encoder_forward.5} parent=1 // pred_check_branch
      %572 = sbr.rel (0) target = $region37
    $region36: #{conv_encoder_forward.5} parent=1 // pred_region
      _
    $region37: #{conv_encoder_forward.5} parent=1 // pred_fallthru
      _
    %573 = vsyncpa [#allocation3], 1
    %574 = vsyncpa [#allocation5], 1

</llo_original>
